<compile_context>
chip_gen: v7x
topology: tpu7x:2x2x1
jax: 0.10.0
libtpu: 0.0.40
codegen_flags: <defaults>
</compile_context>

<pallas_src>
import functools

import jax
import jax.numpy as jnp
from jax.experimental import pallas as pl
from jax.experimental.pallas import tpu as pltpu


def _round_up(n, m):
    return (n + m - 1) // m * m


def _tpu_hw_params():
    """(physical VMEM bytes, preferred MXU M dimension) for the local chip."""
    try:
        kind = jax.devices()[0].device_kind.lower()
    except Exception:  # pragma: no cover - defensive
        kind = ""
    try:
        phys_vmem = int(pltpu.get_tpu_info().vmem_capacity_bytes)
    except Exception:  # pragma: no cover - defensive
        phys_vmem = (64 << 20) if "v7" in kind else (128 << 20)
    # 128x128 MXUs up through v5; 256x256 on v6e/v7x.
    mxu_m = 128 if any(v in kind for v in ("v2", "v3", "v4", "v5")) else 256
    return phys_vmem, mxu_m


def _gru_kernel(xp_ref, h0_ref, wzrh_ref, wih_ref, out_ref, h_scratch,
                *, hp, tl, mm_dtype, act_dtype, unroll):
    """One grid step = `tl` timesteps for one batch block.

    xp_ref   : (tl, tb, 3*hp) mm_dtype  hoisted x-projections [xz | xr | xi]
    h0_ref   : (tb, hp)       f32       initial hidden state
    wzrh_ref : (hp, 2*hp)     mm_dtype  fused [Wz_h | Wr_h]
    wih_ref  : (hp, hp)       mm_dtype  Wi_h
    out_ref  : (tl, tb, hp)   out dtype
    h_scratch: (tb, hp)       f32       hidden state carried across time blocks
    """
    t_blk = pl.program_id(1)   # time-block axis (sequential / "arbitrary")

    @pl.when(t_blk == 0)
    def _():
        h_scratch[...] = h0_ref[...].astype(jnp.float32)

    wzrh = wzrh_ref[...]
    wih = wih_ref[...]

    def step(t, h):
        xp_t = xp_ref[t].astype(jnp.float32)                # (tb, 3*hp)
        # Fused z/r gate: one (tb,hp)@(hp,2hp) bf16 matmul, f32 accumulation.
        zr_pre = xp_t[:, :2 * hp] + jnp.dot(
            h.astype(mm_dtype), wzrh, preferred_element_type=jnp.float32)
        zr = jax.nn.sigmoid(zr_pre.astype(act_dtype)).astype(jnp.float32)
        z = zr[:, :hp]
        r = zr[:, hp:]
        i_pre = xp_t[:, 2 * hp:] + jnp.dot(
            (r * h).astype(mm_dtype), wih, preferred_element_type=jnp.float32)
        inter = jnp.tanh(i_pre.astype(act_dtype)).astype(jnp.float32)
        # (1-z)*h + z*inter  ==  h + z*(inter - h)   (one fewer multiply)
        h_new = h + z * (inter - h)
        out_ref[t] = h_new.astype(out_ref.dtype)
        return h_new

    h_scratch[...] = jax.lax.fori_loop(0, tl, step, h_scratch[...],
                                       unroll=unroll)


@functools.partial(jax.jit, static_argnames=(
    "matmul_dtype", "out_dtype", "act_dtype", "tl", "tb"))
def gru_forward(x, h0, w_z, w_r, w_inter, *, matmul_dtype=jnp.bfloat16,
                out_dtype=jnp.float32, act_dtype=jnp.float32,
                tl=None, tb=None):
    """x: (L, B, I); h0: (B, H); w_z, w_r: (H, I+H); w_inter: (H, H+I)."""
    L, B, I = x.shape
    H = h0.shape[1]
    md = jnp.dtype(matmul_dtype)
    od = jnp.dtype(out_dtype)
    ad = jnp.dtype(act_dtype)

    # ---- lane/sublane-aligned padded sizes (zero-padding is exact here) ----
    Hp = _round_up(H, 128)            # lane dim multiple of 128
    Bp0 = _round_up(B, 8)             # sublane dim multiple of 8

    phys_vmem, mxu_m = _tpu_hw_params()

    # ---- batch tile: per-chip MXU-M cap, divisor-friendly, >=2 blocks ------
    auto_tb = tb is None
    if auto_tb:
        max_tb = mxu_m
        if Bp0 >= 16:   # leave >= 2 batch blocks so v7x's 2 TCs both work
            max_tb = min(max_tb, _round_up((Bp0 + 1) // 2, 8))
        cands = [c for c in (256, 128, 64, 32, 16, 8) if c <= max_tb] or [8]
        ok = [c for c in cands
              if _round_up(Bp0, c) - Bp0 <= max(Bp0 // 8, 0)]   # <=12.5% waste
        tb = max(ok) if ok else min(cands,
                                    key=lambda c: (_round_up(Bp0, c), -c))

    # ---- VMEM-budget-driven time-block size --------------------------------
    xp_b = md.itemsize
    out_b = od.itemsize
    w_b = md.itemsize

    def vmem_usage(tb_, tl_):
        fixed = (2 * 3 * Hp * Hp * w_b     # fused h-weights (double-buffered)
                 + 2 * tb_ * Hp * 4        # h0 block (double-buffered)
                 + tb_ * Hp * 4            # h scratch
                 + 4 * tb_ * 3 * Hp * 4)   # headroom: in-kernel temporaries
        stream = 2 * tl_ * tb_ * (3 * Hp * xp_b + Hp * out_b)  # xp + out bufs
        return fixed + stream

    budget = int(0.45 * phys_vmem)         # leave room for compiler scratch
    auto_tl = tl is None
    if auto_tl:
        tl = max(1, min(L, 32))
        while tl > 1 and vmem_usage(tb, tl) > budget:
            tl //= 2
    if auto_tb:
        while tb > 8 and vmem_usage(tb, tl) > budget:
            tb = max(8, tb // 2)
    # TODO(synk): if (tb=8, tl=1) still overflows (very large Hp, esp. v7x),
    # stream the weight panels from HBM instead of shrinking further.

    Bp = _round_up(Bp0, tb)
    Lp = _round_up(L, tl)
    unroll = max(1, min(tl, 8))            # integer partial unroll

    # ---- split PyTorch Linear weights (out,in) -> (in,out) pieces ----------
    wz_x, wz_h = w_z[:, :I].T, w_z[:, I:].T          # (I,H), (H,H)
    wr_x, wr_h = w_r[:, :I].T, w_r[:, I:].T
    wi_h, wi_x = w_inter[:, :H].T, w_inter[:, H:].T  # (H,H), (I,H)

    def padc(w, rows, cols):
        return jnp.pad(w, ((0, rows - w.shape[0]), (0, cols - w.shape[1])))

    # ---- hoist all x-side projections out of the recurrence ----------------
    # One big (Lp*Bp, I) @ (I, 3*Hp) matmul; columns ordered [xz | xr | xi].
    # xp is streamed in the matmul dtype (bf16 by default) to halve DMA.
    wx_all = jnp.concatenate(
        [padc(wz_x, I, Hp), padc(wr_x, I, Hp), padc(wi_x, I, Hp)], axis=1)
    xb = jnp.pad(x, ((0, Lp - L), (0, Bp - B), (0, 0)))          # (Lp,Bp,I)
    xp = jnp.dot(xb.reshape(Lp * Bp, I).astype(md), wx_all.astype(md),
                 preferred_element_type=jnp.float32
                 ).reshape(Lp, Bp, 3 * Hp).astype(md)

    # ---- fused / padded h-side weights --------------------------------------
    wzr_h = jnp.concatenate([padc(wz_h, Hp, Hp), padc(wr_h, Hp, Hp)],
                            axis=1).astype(md)                   # (Hp, 2Hp)
    wi_hp = padc(wi_h, Hp, Hp).astype(md)                        # (Hp, Hp)
    h0p = jnp.pad(h0, ((0, Bp - B), (0, Hp - H))).astype(jnp.float32)

    grid = (Bp // tb, Lp // tl)   # (parallel batch blocks, sequential time)

    # Physical-VMEM-aware limit: always set (v5e's 16 MiB scoped default is
    # too small), never above 90% of physical (valid on v7x's 64 MiB).
    vmem_limit = int(min(0.9 * phys_vmem,
                         max(vmem_usage(tb, tl) * 1.5, 32 << 20)))
    cparams = pltpu.CompilerParams(
        dimension_semantics=("parallel", "arbitrary"),
        vmem_limit_bytes=vmem_limit)

    cost = pl.CostEstimate(
        flops=int(2 * Lp * Bp * 3 * Hp * Hp + 10 * Lp * Bp * Hp),
        transcendentals=int(3 * Lp * Bp * Hp),
        bytes_accessed=int(Lp * Bp * 3 * Hp * xp_b + Lp * Bp * Hp * out_b
                           + 3 * Hp * Hp * w_b + Bp * Hp * 4))

    kernel = functools.partial(_gru_kernel, hp=Hp, tl=tl, mm_dtype=md,
                               act_dtype=ad, unroll=unroll)

    out = pl.pallas_call(
        kernel,
        out_shape=jax.ShapeDtypeStruct((Lp, Bp, Hp), od),
        grid_spec=pltpu.PrefetchScalarGridSpec(
            num_scalar_prefetch=0,
            grid=grid,
            in_specs=[
                pl.BlockSpec((tl, tb, 3 * Hp), lambda b, t: (t, b, 0)),  # xp
                pl.BlockSpec((tb, Hp), lambda b, t: (b, 0)),             # h0
                # Invariant weights (constant index_map) — see TODO at top
                # about single-buffering / streaming them for very large Hp.
                pl.BlockSpec((Hp, 2 * Hp), lambda b, t: (0, 0)),         # wzr_h
                pl.BlockSpec((Hp, Hp), lambda b, t: (0, 0)),             # wi_h
            ],
            out_specs=pl.BlockSpec((tl, tb, Hp), lambda b, t: (t, b, 0)),
            scratch_shapes=[pltpu.VMEM((tb, Hp), jnp.float32)],
        ),
        compiler_params=cparams,
        cost_estimate=cost,
    )(xp, h0p, wzr_h, wi_hp)

    return out[:L, :B, :H]


def gru_forward_ref(x, h0, w_z, w_r, w_inter):
    """Pure-JAX reference mirroring the PyTorch one_step/forward exactly."""
    def one_step(h, xt):
        xh = jnp.concatenate([xt, h], axis=-1)
        z = jax.nn.sigmoid(xh @ w_z.T)
        r = jax.nn.sigmoid(xh @ w_r.T)
        rh_x = jnp.concatenate([r * h, xt], axis=-1)
        inter = jnp.tanh(rh_x @ w_inter.T)
        h_new = (1.0 - z) * h + z * inter
        return h_new, h_new
    _, h_full = jax.lax.scan(one_step, h0, x)
    return h_full


if __name__ == "__main__":
    L, B, I, H = 8, 4, 16, 32   # seq len, batch, input (embedding) dim, hidden

    key = jax.random.PRNGKey(0)
    kx, kz, kr, ki = jax.random.split(key, 4)

    x = jax.random.normal(kx, (L, B, I), dtype=jnp.float32)
    h0 = jnp.zeros((B, H), dtype=jnp.float32)   # init_memory(batch_size)

    bound = 1.0 / jnp.sqrt(jnp.float32(I + H))
    w_z = jax.random.uniform(kz, (H, I + H), jnp.float32, -bound, bound)
    w_r = jax.random.uniform(kr, (H, I + H), jnp.float32, -bound, bound)
    w_inter = jax.random.uniform(ki, (H, H + I), jnp.float32, -bound, bound)

    ref = gru_forward_ref(x, h0, w_z, w_r, w_inter)

    # Default path: bf16 MXU operands + bf16 xp streaming, f32 accumulation.
    out = jax.block_until_ready(gru_forward(x, h0, w_z, w_r, w_inter))
    assert out.shape == (L, B, H)
    assert jnp.allclose(out, ref, atol=3e-2, rtol=3e-2), "bf16 mismatch vs reference"

    # Exact f32 matmul path: tight tolerance vs. the pure-JAX reference.
    out_f32 = jax.block_until_ready(
        gru_forward(x, h0, w_z, w_r, w_inter, matmul_dtype=jnp.float32))
    assert jnp.allclose(out_f32, ref, atol=1e-5, rtol=1e-5), "f32 mismatch vs reference"

    print("KERNEL_OK")
</pallas_src>

<mosaic_0001>
module attributes {stable_mosaic.version = 11 : i64} {
  func.func @_gru_kernel(%arg0: i32, %arg1: i32, %arg2: memref<8x8x384xbf16, #tpu.memory_space<vmem>>, %arg3: memref<8x128xf32, #tpu.memory_space<vmem>>, %arg4: memref<128x256xbf16, #tpu.memory_space<vmem>>, %arg5: memref<128x128xbf16, #tpu.memory_space<vmem>>, %arg6: memref<8x8x128xf32, #tpu.memory_space<vmem>>, %arg7: memref<8x128xf32, #tpu.memory_space<vmem>>) attributes {dimension_semantics = [#tpu.dimension_semantics<parallel>, #tpu.dimension_semantics<arbitrary>], iteration_bounds = array<i64: 1, 1>, scalar_prefetch = 0 : i64, scratch_operands = 1 : i64, tpu.core_type = #tpu.core_type<tc>, window_params = [{transform_indices = @transform_0, window_bounds = array<i64: 8, 8, 384>}, {transform_indices = @transform_1, window_bounds = array<i64: 8, 128>}, {pipeline_mode = #tpu.pipeline_mode<synchronous>, transform_indices = @transform_2, window_bounds = array<i64: 128, 256>}, {pipeline_mode = #tpu.pipeline_mode<synchronous>, transform_indices = @transform_3, window_bounds = array<i64: 128, 128>}, {transform_indices = @transform_4, window_bounds = array<i64: 8, 8, 128>}]} {
    %c0_i32 = arith.constant 0 : i32
    %0 = arith.cmpi eq, %arg1, %c0_i32 : i32
    %1 = arith.extui %0 : i1 to i32
    %c0_i32_0 = arith.constant 0 : i32
    %2 = arith.cmpi ne, %1, %c0_i32_0 : i32
    scf.if %2 {
      %c0_64 = arith.constant 0 : index
      %c0_65 = arith.constant 0 : index
      %231 = vector.load %arg3[%c0_64, %c0_65] : memref<8x128xf32, #tpu.memory_space<vmem>>, vector<8x128xf32>
      %c0_66 = arith.constant 0 : index
      %c0_67 = arith.constant 0 : index
      %232 = vector.load %arg7[%c0_66, %c0_67] : memref<8x128xf32, #tpu.memory_space<vmem>>, vector<8x128xf32>
      tpu.vector_store %arg7[%c0_66, %c0_67], %231 {strides = array<i32>} : memref<8x128xf32, #tpu.memory_space<vmem>>, vector<8x128xf32>,
    } else {
    }
    %c0 = arith.constant 0 : index
    %c0_1 = arith.constant 0 : index
    %3 = vector.load %arg4[%c0, %c0_1] : memref<128x256xbf16, #tpu.memory_space<vmem>>, vector<128x256xbf16>
    %c0_2 = arith.constant 0 : index
    %c0_3 = arith.constant 0 : index
    %4 = vector.load %arg5[%c0_2, %c0_3] : memref<128x128xbf16, #tpu.memory_space<vmem>>, vector<128x128xbf16>
    %c0_4 = arith.constant 0 : index
    %c0_5 = arith.constant 0 : index
    %5 = vector.load %arg7[%c0_4, %c0_5] : memref<8x128xf32, #tpu.memory_space<vmem>>, vector<8x128xf32>
    %c0_i32_6 = arith.constant 0 : i32
    %6 = arith.index_cast %c0_i32_6 : i32 to index
    %c0_7 = arith.constant 0 : index
    %c0_8 = arith.constant 0 : index
    %7 = vector.load %arg2[%6, %c0_7, %c0_8] : memref<8x8x384xbf16, #tpu.memory_space<vmem>>, vector<1x8x384xbf16>
    %8 = vector.shape_cast %7 : vector<1x8x384xbf16> to vector<8x384xbf16>
    %9 = arith.extf %8 : vector<8x384xbf16> to vector<8x384xf32>
    %10 = vector.extract_strided_slice %9 {offsets = [0, 0], sizes = [8, 256], strides = [1, 1]} : vector<8x384xf32> to vector<8x256xf32>
    %11 = arith.truncf %5 : vector<8x128xf32> to vector<8x128xbf16>
    %cst = arith.constant dense<0.000000e+00> : vector<8x256xf32>
    %12 = tpu.matmul %11, %3, %cst {dimension_numbers = #tpu.dot_dimension_numbers<[1], [0], [0], [1], [0, 0, 1, 1], [], []>} : vector<8x128xbf16>, vector<128x256xbf16>, vector<8x256xf32> -> vector<8x256xf32>
    %13 = arith.addf %10, %12 : vector<8x256xf32>
    %14 = arith.negf %13 : vector<8x256xf32>
    %15 = math.exp %14 : vector<8x256xf32>
    %cst_9 = arith.constant 1.000000e+00 : f32
    %16 = vector.broadcast %cst_9 : f32 to vector<8x256xf32>
    %17 = arith.addf %16, %15 : vector<8x256xf32>
    %18 = arith.divf %16, %17 : vector<8x256xf32>
    %19 = vector.extract_strided_slice %18 {offsets = [0, 0], sizes = [8, 128], strides = [1, 1]} : vector<8x256xf32> to vector<8x128xf32>
    %20 = vector.extract_strided_slice %18 {offsets = [0, 128], sizes = [8, 128], strides = [1, 1]} : vector<8x256xf32> to vector<8x128xf32>
    %21 = vector.extract_strided_slice %9 {offsets = [0, 256], sizes = [8, 128], strides = [1, 1]} : vector<8x384xf32> to vector<8x128xf32>
    %22 = arith.mulf %20, %5 : vector<8x128xf32>
    %23 = arith.truncf %22 : vector<8x128xf32> to vector<8x128xbf16>
    %cst_10 = arith.constant dense<0.000000e+00> : vector<8x128xf32>
    %24 = tpu.matmul %23, %4, %cst_10 {dimension_numbers = #tpu.dot_dimension_numbers<[1], [0], [0], [1], [0, 0, 1, 1], [], []>} : vector<8x128xbf16>, vector<128x128xbf16>, vector<8x128xf32> -> vector<8x128xf32>
    %25 = arith.addf %21, %24 : vector<8x128xf32>
    %26 = math.tanh %25 : vector<8x128xf32>
    %27 = arith.subf %26, %5 : vector<8x128xf32>
    %28 = arith.mulf %19, %27 : vector<8x128xf32>
    %29 = arith.addf %5, %28 : vector<8x128xf32>
    %30 = arith.index_cast %c0_i32_6 : i32 to index
    %c0_11 = arith.constant 0 : index
    %c0_12 = arith.constant 0 : index
    %31 = vector.load %arg6[%30, %c0_11, %c0_12] : memref<8x8x128xf32, #tpu.memory_space<vmem>>, vector<1x8x128xf32>
    %32 = vector.shape_cast %31 : vector<1x8x128xf32> to vector<8x128xf32>
    %33 = vector.shape_cast %29 : vector<8x128xf32> to vector<1x8x128xf32>
    tpu.vector_store %arg6[%30, %c0_11, %c0_12], %33 {strides = array<i32>} : memref<8x8x128xf32, #tpu.memory_space<vmem>>, vector<1x8x128xf32>,
    %c1_i32 = arith.constant 1 : i32
    %34 = arith.index_cast %c1_i32 : i32 to index
    %c0_13 = arith.constant 0 : index
    %c0_14 = arith.constant 0 : index
    %35 = vector.load %arg2[%34, %c0_13, %c0_14] : memref<8x8x384xbf16, #tpu.memory_space<vmem>>, vector<1x8x384xbf16>
    %36 = vector.shape_cast %35 : vector<1x8x384xbf16> to vector<8x384xbf16>
    %37 = arith.extf %36 : vector<8x384xbf16> to vector<8x384xf32>
    %38 = vector.extract_strided_slice %37 {offsets = [0, 0], sizes = [8, 256], strides = [1, 1]} : vector<8x384xf32> to vector<8x256xf32>
    %39 = arith.truncf %29 : vector<8x128xf32> to vector<8x128xbf16>
    %cst_15 = arith.constant dense<0.000000e+00> : vector<8x256xf32>
    %40 = tpu.matmul %39, %3, %cst_15 {dimension_numbers = #tpu.dot_dimension_numbers<[1], [0], [0], [1], [0, 0, 1, 1], [], []>} : vector<8x128xbf16>, vector<128x256xbf16>, vector<8x256xf32> -> vector<8x256xf32>
    %41 = arith.addf %38, %40 : vector<8x256xf32>
    %42 = arith.negf %41 : vector<8x256xf32>
    %43 = math.exp %42 : vector<8x256xf32>
    %cst_16 = arith.constant 1.000000e+00 : f32
    %44 = vector.broadcast %cst_16 : f32 to vector<8x256xf32>
    %45 = arith.addf %44, %43 : vector<8x256xf32>
    %46 = arith.divf %44, %45 : vector<8x256xf32>
    %47 = vector.extract_strided_slice %46 {offsets = [0, 0], sizes = [8, 128], strides = [1, 1]} : vector<8x256xf32> to vector<8x128xf32>
    %48 = vector.extract_strided_slice %46 {offsets = [0, 128], sizes = [8, 128], strides = [1, 1]} : vector<8x256xf32> to vector<8x128xf32>
    %49 = vector.extract_strided_slice %37 {offsets = [0, 256], sizes = [8, 128], strides = [1, 1]} : vector<8x384xf32> to vector<8x128xf32>
    %50 = arith.mulf %48, %29 : vector<8x128xf32>
    %51 = arith.truncf %50 : vector<8x128xf32> to vector<8x128xbf16>
    %cst_17 = arith.constant dense<0.000000e+00> : vector<8x128xf32>
    %52 = tpu.matmul %51, %4, %cst_17 {dimension_numbers = #tpu.dot_dimension_numbers<[1], [0], [0], [1], [0, 0, 1, 1], [], []>} : vector<8x128xbf16>, vector<128x128xbf16>, vector<8x128xf32> -> vector<8x128xf32>
    %53 = arith.addf %49, %52 : vector<8x128xf32>
    %54 = math.tanh %53 : vector<8x128xf32>
    %55 = arith.subf %54, %29 : vector<8x128xf32>
    %56 = arith.mulf %47, %55 : vector<8x128xf32>
    %57 = arith.addf %29, %56 : vector<8x128xf32>
    %58 = arith.index_cast %c1_i32 : i32 to index
    %c0_18 = arith.constant 0 : index
    %c0_19 = arith.constant 0 : index
    %59 = vector.load %arg6[%58, %c0_18, %c0_19] : memref<8x8x128xf32, #tpu.memory_space<vmem>>, vector<1x8x128xf32>
    %60 = vector.shape_cast %59 : vector<1x8x128xf32> to vector<8x128xf32>
    %61 = vector.shape_cast %57 : vector<8x128xf32> to vector<1x8x128xf32>
    tpu.vector_store %arg6[%58, %c0_18, %c0_19], %61 {strides = array<i32>} : memref<8x8x128xf32, #tpu.memory_space<vmem>>, vector<1x8x128xf32>,
    %c2_i32 = arith.constant 2 : i32
    %62 = arith.index_cast %c2_i32 : i32 to index
    %c0_20 = arith.constant 0 : index
    %c0_21 = arith.constant 0 : index
    %63 = vector.load %arg2[%62, %c0_20, %c0_21] : memref<8x8x384xbf16, #tpu.memory_space<vmem>>, vector<1x8x384xbf16>
    %64 = vector.shape_cast %63 : vector<1x8x384xbf16> to vector<8x384xbf16>
    %65 = arith.extf %64 : vector<8x384xbf16> to vector<8x384xf32>
    %66 = vector.extract_strided_slice %65 {offsets = [0, 0], sizes = [8, 256], strides = [1, 1]} : vector<8x384xf32> to vector<8x256xf32>
    %67 = arith.truncf %57 : vector<8x128xf32> to vector<8x128xbf16>
    %cst_22 = arith.constant dense<0.000000e+00> : vector<8x256xf32>
    %68 = tpu.matmul %67, %3, %cst_22 {dimension_numbers = #tpu.dot_dimension_numbers<[1], [0], [0], [1], [0, 0, 1, 1], [], []>} : vector<8x128xbf16>, vector<128x256xbf16>, vector<8x256xf32> -> vector<8x256xf32>
    %69 = arith.addf %66, %68 : vector<8x256xf32>
    %70 = arith.negf %69 : vector<8x256xf32>
    %71 = math.exp %70 : vector<8x256xf32>
    %cst_23 = arith.constant 1.000000e+00 : f32
    %72 = vector.broadcast %cst_23 : f32 to vector<8x256xf32>
    %73 = arith.addf %72, %71 : vector<8x256xf32>
    %74 = arith.divf %72, %73 : vector<8x256xf32>
    %75 = vector.extract_strided_slice %74 {offsets = [0, 0], sizes = [8, 128], strides = [1, 1]} : vector<8x256xf32> to vector<8x128xf32>
    %76 = vector.extract_strided_slice %74 {offsets = [0, 128], sizes = [8, 128], strides = [1, 1]} : vector<8x256xf32> to vector<8x128xf32>
    %77 = vector.extract_strided_slice %65 {offsets = [0, 256], sizes = [8, 128], strides = [1, 1]} : vector<8x384xf32> to vector<8x128xf32>
    %78 = arith.mulf %76, %57 : vector<8x128xf32>
    %79 = arith.truncf %78 : vector<8x128xf32> to vector<8x128xbf16>
    %cst_24 = arith.constant dense<0.000000e+00> : vector<8x128xf32>
    %80 = tpu.matmul %79, %4, %cst_24 {dimension_numbers = #tpu.dot_dimension_numbers<[1], [0], [0], [1], [0, 0, 1, 1], [], []>} : vector<8x128xbf16>, vector<128x128xbf16>, vector<8x128xf32> -> vector<8x128xf32>
    %81 = arith.addf %77, %80 : vector<8x128xf32>
    %82 = math.tanh %81 : vector<8x128xf32>
    %83 = arith.subf %82, %57 : vector<8x128xf32>
    %84 = arith.mulf %75, %83 : vector<8x128xf32>
    %85 = arith.addf %57, %84 : vector<8x128xf32>
    %86 = arith.index_cast %c2_i32 : i32 to index
    %c0_25 = arith.constant 0 : index
    %c0_26 = arith.constant 0 : index
    %87 = vector.load %arg6[%86, %c0_25, %c0_26] : memref<8x8x128xf32, #tpu.memory_space<vmem>>, vector<1x8x128xf32>
    %88 = vector.shape_cast %87 : vector<1x8x128xf32> to vector<8x128xf32>
    %89 = vector.shape_cast %85 : vector<8x128xf32> to vector<1x8x128xf32>
    tpu.vector_store %arg6[%86, %c0_25, %c0_26], %89 {strides = array<i32>} : memref<8x8x128xf32, #tpu.memory_space<vmem>>, vector<1x8x128xf32>,
    %c3_i32 = arith.constant 3 : i32
    %90 = arith.index_cast %c3_i32 : i32 to index
    %c0_27 = arith.constant 0 : index
    %c0_28 = arith.constant 0 : index
    %91 = vector.load %arg2[%90, %c0_27, %c0_28] : memref<8x8x384xbf16, #tpu.memory_space<vmem>>, vector<1x8x384xbf16>
    %92 = vector.shape_cast %91 : vector<1x8x384xbf16> to vector<8x384xbf16>
    %93 = arith.extf %92 : vector<8x384xbf16> to vector<8x384xf32>
    %94 = vector.extract_strided_slice %93 {offsets = [0, 0], sizes = [8, 256], strides = [1, 1]} : vector<8x384xf32> to vector<8x256xf32>
    %95 = arith.truncf %85 : vector<8x128xf32> to vector<8x128xbf16>
    %cst_29 = arith.constant dense<0.000000e+00> : vector<8x256xf32>
    %96 = tpu.matmul %95, %3, %cst_29 {dimension_numbers = #tpu.dot_dimension_numbers<[1], [0], [0], [1], [0, 0, 1, 1], [], []>} : vector<8x128xbf16>, vector<128x256xbf16>, vector<8x256xf32> -> vector<8x256xf32>
    %97 = arith.addf %94, %96 : vector<8x256xf32>
    %98 = arith.negf %97 : vector<8x256xf32>
    %99 = math.exp %98 : vector<8x256xf32>
    %cst_30 = arith.constant 1.000000e+00 : f32
    %100 = vector.broadcast %cst_30 : f32 to vector<8x256xf32>
    %101 = arith.addf %100, %99 : vector<8x256xf32>
    %102 = arith.divf %100, %101 : vector<8x256xf32>
    %103 = vector.extract_strided_slice %102 {offsets = [0, 0], sizes = [8, 128], strides = [1, 1]} : vector<8x256xf32> to vector<8x128xf32>
    %104 = vector.extract_strided_slice %102 {offsets = [0, 128], sizes = [8, 128], strides = [1, 1]} : vector<8x256xf32> to vector<8x128xf32>
    %105 = vector.extract_strided_slice %93 {offsets = [0, 256], sizes = [8, 128], strides = [1, 1]} : vector<8x384xf32> to vector<8x128xf32>
    %106 = arith.mulf %104, %85 : vector<8x128xf32>
    %107 = arith.truncf %106 : vector<8x128xf32> to vector<8x128xbf16>
    %cst_31 = arith.constant dense<0.000000e+00> : vector<8x128xf32>
    %108 = tpu.matmul %107, %4, %cst_31 {dimension_numbers = #tpu.dot_dimension_numbers<[1], [0], [0], [1], [0, 0, 1, 1], [], []>} : vector<8x128xbf16>, vector<128x128xbf16>, vector<8x128xf32> -> vector<8x128xf32>
    %109 = arith.addf %105, %108 : vector<8x128xf32>
    %110 = math.tanh %109 : vector<8x128xf32>
    %111 = arith.subf %110, %85 : vector<8x128xf32>
    %112 = arith.mulf %103, %111 : vector<8x128xf32>
    %113 = arith.addf %85, %112 : vector<8x128xf32>
    %114 = arith.index_cast %c3_i32 : i32 to index
    %c0_32 = arith.constant 0 : index
    %c0_33 = arith.constant 0 : index
    %115 = vector.load %arg6[%114, %c0_32, %c0_33] : memref<8x8x128xf32, #tpu.memory_space<vmem>>, vector<1x8x128xf32>
    %116 = vector.shape_cast %115 : vector<1x8x128xf32> to vector<8x128xf32>
    %117 = vector.shape_cast %113 : vector<8x128xf32> to vector<1x8x128xf32>
    tpu.vector_store %arg6[%114, %c0_32, %c0_33], %117 {strides = array<i32>} : memref<8x8x128xf32, #tpu.memory_space<vmem>>, vector<1x8x128xf32>,
    %c4_i32 = arith.constant 4 : i32
    %118 = arith.index_cast %c4_i32 : i32 to index
    %c0_34 = arith.constant 0 : index
    %c0_35 = arith.constant 0 : index
    %119 = vector.load %arg2[%118, %c0_34, %c0_35] : memref<8x8x384xbf16, #tpu.memory_space<vmem>>, vector<1x8x384xbf16>
    %120 = vector.shape_cast %119 : vector<1x8x384xbf16> to vector<8x384xbf16>
    %121 = arith.extf %120 : vector<8x384xbf16> to vector<8x384xf32>
    %122 = vector.extract_strided_slice %121 {offsets = [0, 0], sizes = [8, 256], strides = [1, 1]} : vector<8x384xf32> to vector<8x256xf32>
    %123 = arith.truncf %113 : vector<8x128xf32> to vector<8x128xbf16>
    %cst_36 = arith.constant dense<0.000000e+00> : vector<8x256xf32>
    %124 = tpu.matmul %123, %3, %cst_36 {dimension_numbers = #tpu.dot_dimension_numbers<[1], [0], [0], [1], [0, 0, 1, 1], [], []>} : vector<8x128xbf16>, vector<128x256xbf16>, vector<8x256xf32> -> vector<8x256xf32>
    %125 = arith.addf %122, %124 : vector<8x256xf32>
    %126 = arith.negf %125 : vector<8x256xf32>
    %127 = math.exp %126 : vector<8x256xf32>
    %cst_37 = arith.constant 1.000000e+00 : f32
    %128 = vector.broadcast %cst_37 : f32 to vector<8x256xf32>
    %129 = arith.addf %128, %127 : vector<8x256xf32>
    %130 = arith.divf %128, %129 : vector<8x256xf32>
    %131 = vector.extract_strided_slice %130 {offsets = [0, 0], sizes = [8, 128], strides = [1, 1]} : vector<8x256xf32> to vector<8x128xf32>
    %132 = vector.extract_strided_slice %130 {offsets = [0, 128], sizes = [8, 128], strides = [1, 1]} : vector<8x256xf32> to vector<8x128xf32>
    %133 = vector.extract_strided_slice %121 {offsets = [0, 256], sizes = [8, 128], strides = [1, 1]} : vector<8x384xf32> to vector<8x128xf32>
    %134 = arith.mulf %132, %113 : vector<8x128xf32>
    %135 = arith.truncf %134 : vector<8x128xf32> to vector<8x128xbf16>
    %cst_38 = arith.constant dense<0.000000e+00> : vector<8x128xf32>
    %136 = tpu.matmul %135, %4, %cst_38 {dimension_numbers = #tpu.dot_dimension_numbers<[1], [0], [0], [1], [0, 0, 1, 1], [], []>} : vector<8x128xbf16>, vector<128x128xbf16>, vector<8x128xf32> -> vector<8x128xf32>
    %137 = arith.addf %133, %136 : vector<8x128xf32>
    %138 = math.tanh %137 : vector<8x128xf32>
    %139 = arith.subf %138, %113 : vector<8x128xf32>
    %140 = arith.mulf %131, %139 : vector<8x128xf32>
    %141 = arith.addf %113, %140 : vector<8x128xf32>
    %142 = arith.index_cast %c4_i32 : i32 to index
    %c0_39 = arith.constant 0 : index
    %c0_40 = arith.constant 0 : index
    %143 = vector.load %arg6[%142, %c0_39, %c0_40] : memref<8x8x128xf32, #tpu.memory_space<vmem>>, vector<1x8x128xf32>
    %144 = vector.shape_cast %143 : vector<1x8x128xf32> to vector<8x128xf32>
    %145 = vector.shape_cast %141 : vector<8x128xf32> to vector<1x8x128xf32>
    tpu.vector_store %arg6[%142, %c0_39, %c0_40], %145 {strides = array<i32>} : memref<8x8x128xf32, #tpu.memory_space<vmem>>, vector<1x8x128xf32>,
    %c5_i32 = arith.constant 5 : i32
    %146 = arith.index_cast %c5_i32 : i32 to index
    %c0_41 = arith.constant 0 : index
    %c0_42 = arith.constant 0 : index
    %147 = vector.load %arg2[%146, %c0_41, %c0_42] : memref<8x8x384xbf16, #tpu.memory_space<vmem>>, vector<1x8x384xbf16>
    %148 = vector.shape_cast %147 : vector<1x8x384xbf16> to vector<8x384xbf16>
    %149 = arith.extf %148 : vector<8x384xbf16> to vector<8x384xf32>
    %150 = vector.extract_strided_slice %149 {offsets = [0, 0], sizes = [8, 256], strides = [1, 1]} : vector<8x384xf32> to vector<8x256xf32>
    %151 = arith.truncf %141 : vector<8x128xf32> to vector<8x128xbf16>
    %cst_43 = arith.constant dense<0.000000e+00> : vector<8x256xf32>
    %152 = tpu.matmul %151, %3, %cst_43 {dimension_numbers = #tpu.dot_dimension_numbers<[1], [0], [0], [1], [0, 0, 1, 1], [], []>} : vector<8x128xbf16>, vector<128x256xbf16>, vector<8x256xf32> -> vector<8x256xf32>
    %153 = arith.addf %150, %152 : vector<8x256xf32>
    %154 = arith.negf %153 : vector<8x256xf32>
    %155 = math.exp %154 : vector<8x256xf32>
    %cst_44 = arith.constant 1.000000e+00 : f32
    %156 = vector.broadcast %cst_44 : f32 to vector<8x256xf32>
    %157 = arith.addf %156, %155 : vector<8x256xf32>
    %158 = arith.divf %156, %157 : vector<8x256xf32>
    %159 = vector.extract_strided_slice %158 {offsets = [0, 0], sizes = [8, 128], strides = [1, 1]} : vector<8x256xf32> to vector<8x128xf32>
    %160 = vector.extract_strided_slice %158 {offsets = [0, 128], sizes = [8, 128], strides = [1, 1]} : vector<8x256xf32> to vector<8x128xf32>
    %161 = vector.extract_strided_slice %149 {offsets = [0, 256], sizes = [8, 128], strides = [1, 1]} : vector<8x384xf32> to vector<8x128xf32>
    %162 = arith.mulf %160, %141 : vector<8x128xf32>
    %163 = arith.truncf %162 : vector<8x128xf32> to vector<8x128xbf16>
    %cst_45 = arith.constant dense<0.000000e+00> : vector<8x128xf32>
    %164 = tpu.matmul %163, %4, %cst_45 {dimension_numbers = #tpu.dot_dimension_numbers<[1], [0], [0], [1], [0, 0, 1, 1], [], []>} : vector<8x128xbf16>, vector<128x128xbf16>, vector<8x128xf32> -> vector<8x128xf32>
    %165 = arith.addf %161, %164 : vector<8x128xf32>
    %166 = math.tanh %165 : vector<8x128xf32>
    %167 = arith.subf %166, %141 : vector<8x128xf32>
    %168 = arith.mulf %159, %167 : vector<8x128xf32>
    %169 = arith.addf %141, %168 : vector<8x128xf32>
    %170 = arith.index_cast %c5_i32 : i32 to index
    %c0_46 = arith.constant 0 : index
    %c0_47 = arith.constant 0 : index
    %171 = vector.load %arg6[%170, %c0_46, %c0_47] : memref<8x8x128xf32, #tpu.memory_space<vmem>>, vector<1x8x128xf32>
    %172 = vector.shape_cast %171 : vector<1x8x128xf32> to vector<8x128xf32>
    %173 = vector.shape_cast %169 : vector<8x128xf32> to vector<1x8x128xf32>
    tpu.vector_store %arg6[%170, %c0_46, %c0_47], %173 {strides = array<i32>} : memref<8x8x128xf32, #tpu.memory_space<vmem>>, vector<1x8x128xf32>,
    %c6_i32 = arith.constant 6 : i32
    %174 = arith.index_cast %c6_i32 : i32 to index
    %c0_48 = arith.constant 0 : index
    %c0_49 = arith.constant 0 : index
    %175 = vector.load %arg2[%174, %c0_48, %c0_49] : memref<8x8x384xbf16, #tpu.memory_space<vmem>>, vector<1x8x384xbf16>
    %176 = vector.shape_cast %175 : vector<1x8x384xbf16> to vector<8x384xbf16>
    %177 = arith.extf %176 : vector<8x384xbf16> to vector<8x384xf32>
    %178 = vector.extract_strided_slice %177 {offsets = [0, 0], sizes = [8, 256], strides = [1, 1]} : vector<8x384xf32> to vector<8x256xf32>
    %179 = arith.truncf %169 : vector<8x128xf32> to vector<8x128xbf16>
    %cst_50 = arith.constant dense<0.000000e+00> : vector<8x256xf32>
    %180 = tpu.matmul %179, %3, %cst_50 {dimension_numbers = #tpu.dot_dimension_numbers<[1], [0], [0], [1], [0, 0, 1, 1], [], []>} : vector<8x128xbf16>, vector<128x256xbf16>, vector<8x256xf32> -> vector<8x256xf32>
    %181 = arith.addf %178, %180 : vector<8x256xf32>
    %182 = arith.negf %181 : vector<8x256xf32>
    %183 = math.exp %182 : vector<8x256xf32>
    %cst_51 = arith.constant 1.000000e+00 : f32
    %184 = vector.broadcast %cst_51 : f32 to vector<8x256xf32>
    %185 = arith.addf %184, %183 : vector<8x256xf32>
    %186 = arith.divf %184, %185 : vector<8x256xf32>
    %187 = vector.extract_strided_slice %186 {offsets = [0, 0], sizes = [8, 128], strides = [1, 1]} : vector<8x256xf32> to vector<8x128xf32>
    %188 = vector.extract_strided_slice %186 {offsets = [0, 128], sizes = [8, 128], strides = [1, 1]} : vector<8x256xf32> to vector<8x128xf32>
    %189 = vector.extract_strided_slice %177 {offsets = [0, 256], sizes = [8, 128], strides = [1, 1]} : vector<8x384xf32> to vector<8x128xf32>
    %190 = arith.mulf %188, %169 : vector<8x128xf32>
    %191 = arith.truncf %190 : vector<8x128xf32> to vector<8x128xbf16>
    %cst_52 = arith.constant dense<0.000000e+00> : vector<8x128xf32>
    %192 = tpu.matmul %191, %4, %cst_52 {dimension_numbers = #tpu.dot_dimension_numbers<[1], [0], [0], [1], [0, 0, 1, 1], [], []>} : vector<8x128xbf16>, vector<128x128xbf16>, vector<8x128xf32> -> vector<8x128xf32>
    %193 = arith.addf %189, %192 : vector<8x128xf32>
    %194 = math.tanh %193 : vector<8x128xf32>
    %195 = arith.subf %194, %169 : vector<8x128xf32>
    %196 = arith.mulf %187, %195 : vector<8x128xf32>
    %197 = arith.addf %169, %196 : vector<8x128xf32>
    %198 = arith.index_cast %c6_i32 : i32 to index
    %c0_53 = arith.constant 0 : index
    %c0_54 = arith.constant 0 : index
    %199 = vector.load %arg6[%198, %c0_53, %c0_54] : memref<8x8x128xf32, #tpu.memory_space<vmem>>, vector<1x8x128xf32>
    %200 = vector.shape_cast %199 : vector<1x8x128xf32> to vector<8x128xf32>
    %201 = vector.shape_cast %197 : vector<8x128xf32> to vector<1x8x128xf32>
    tpu.vector_store %arg6[%198, %c0_53, %c0_54], %201 {strides = array<i32>} : memref<8x8x128xf32, #tpu.memory_space<vmem>>, vector<1x8x128xf32>,
    %c7_i32 = arith.constant 7 : i32
    %202 = arith.index_cast %c7_i32 : i32 to index
    %c0_55 = arith.constant 0 : index
    %c0_56 = arith.constant 0 : index
    %203 = vector.load %arg2[%202, %c0_55, %c0_56] : memref<8x8x384xbf16, #tpu.memory_space<vmem>>, vector<1x8x384xbf16>
    %204 = vector.shape_cast %203 : vector<1x8x384xbf16> to vector<8x384xbf16>
    %205 = arith.extf %204 : vector<8x384xbf16> to vector<8x384xf32>
    %206 = vector.extract_strided_slice %205 {offsets = [0, 0], sizes = [8, 256], strides = [1, 1]} : vector<8x384xf32> to vector<8x256xf32>
    %207 = arith.truncf %197 : vector<8x128xf32> to vector<8x128xbf16>
    %cst_57 = arith.constant dense<0.000000e+00> : vector<8x256xf32>
    %208 = tpu.matmul %207, %3, %cst_57 {dimension_numbers = #tpu.dot_dimension_numbers<[1], [0], [0], [1], [0, 0, 1, 1], [], []>} : vector<8x128xbf16>, vector<128x256xbf16>, vector<8x256xf32> -> vector<8x256xf32>
    %209 = arith.addf %206, %208 : vector<8x256xf32>
    %210 = arith.negf %209 : vector<8x256xf32>
    %211 = math.exp %210 : vector<8x256xf32>
    %cst_58 = arith.constant 1.000000e+00 : f32
    %212 = vector.broadcast %cst_58 : f32 to vector<8x256xf32>
    %213 = arith.addf %212, %211 : vector<8x256xf32>
    %214 = arith.divf %212, %213 : vector<8x256xf32>
    %215 = vector.extract_strided_slice %214 {offsets = [0, 0], sizes = [8, 128], strides = [1, 1]} : vector<8x256xf32> to vector<8x128xf32>
    %216 = vector.extract_strided_slice %214 {offsets = [0, 128], sizes = [8, 128], strides = [1, 1]} : vector<8x256xf32> to vector<8x128xf32>
    %217 = vector.extract_strided_slice %205 {offsets = [0, 256], sizes = [8, 128], strides = [1, 1]} : vector<8x384xf32> to vector<8x128xf32>
    %218 = arith.mulf %216, %197 : vector<8x128xf32>
    %219 = arith.truncf %218 : vector<8x128xf32> to vector<8x128xbf16>
    %cst_59 = arith.constant dense<0.000000e+00> : vector<8x128xf32>
    %220 = tpu.matmul %219, %4, %cst_59 {dimension_numbers = #tpu.dot_dimension_numbers<[1], [0], [0], [1], [0, 0, 1, 1], [], []>} : vector<8x128xbf16>, vector<128x128xbf16>, vector<8x128xf32> -> vector<8x128xf32>
    %221 = arith.addf %217, %220 : vector<8x128xf32>
    %222 = math.tanh %221 : vector<8x128xf32>
    %223 = arith.subf %222, %197 : vector<8x128xf32>
    %224 = arith.mulf %215, %223 : vector<8x128xf32>
    %225 = arith.addf %197, %224 : vector<8x128xf32>
    %226 = arith.index_cast %c7_i32 : i32 to index
    %c0_60 = arith.constant 0 : index
    %c0_61 = arith.constant 0 : index
    %227 = vector.load %arg6[%226, %c0_60, %c0_61] : memref<8x8x128xf32, #tpu.memory_space<vmem>>, vector<1x8x128xf32>
    %228 = vector.shape_cast %227 : vector<1x8x128xf32> to vector<8x128xf32>
    %229 = vector.shape_cast %225 : vector<8x128xf32> to vector<1x8x128xf32>
    tpu.vector_store %arg6[%226, %c0_60, %c0_61], %229 {strides = array<i32>} : memref<8x8x128xf32, #tpu.memory_space<vmem>>, vector<1x8x128xf32>,
    %c8_i32 = arith.constant 8 : i32
    %c0_62 = arith.constant 0 : index
    %c0_63 = arith.constant 0 : index
    %230 = vector.load %arg7[%c0_62, %c0_63] : memref<8x128xf32, #tpu.memory_space<vmem>>, vector<8x128xf32>
    tpu.vector_store %arg7[%c0_62, %c0_63], %225 {strides = array<i32>} : memref<8x128xf32, #tpu.memory_space<vmem>>, vector<8x128xf32>,
    return
  }
  func.func @transform_0(%arg0: i32, %arg1: i32) -> (i32, i32, i32) {
    %c0_i32 = arith.constant 0 : i32
    %c0_i32_0 = arith.constant 0 : i32
    return %arg1, %arg0, %c0_i32 : i32, i32, i32
  }
  func.func @transform_1(%arg0: i32, %arg1: i32) -> (i32, i32) {
    %c0_i32 = arith.constant 0 : i32
    %c0_i32_0 = arith.constant 0 : i32
    return %arg0, %c0_i32 : i32, i32
  }
  func.func @transform_2(%arg0: i32, %arg1: i32) -> (i32, i32) {
    %c0_i32 = arith.constant 0 : i32
    %c0_i32_0 = arith.constant 0 : i32
    %c0_i32_1 = arith.constant 0 : i32
    return %c0_i32, %c0_i32_0 : i32, i32
  }
  func.func @transform_3(%arg0: i32, %arg1: i32) -> (i32, i32) {
    %c0_i32 = arith.constant 0 : i32
    %c0_i32_0 = arith.constant 0 : i32
    %c0_i32_1 = arith.constant 0 : i32
    return %c0_i32, %c0_i32_0 : i32, i32
  }
  func.func @transform_4(%arg0: i32, %arg1: i32) -> (i32, i32, i32) {
    %c0_i32 = arith.constant 0 : i32
    %c0_i32_0 = arith.constant 0 : i32
    return %arg1, %arg0, %c0_i32 : i32, i32, i32
  }
}

</mosaic_0001>

<llo_original>
// kernel: gru_forward.1
$region0: #{gru_forward.1}
  #allocation0 [shape = 'u32[]', space=smem, size = 0x4, offset = 0x4, fixed_abs, tag = 'smem constant byte address 0x4 - core index']
  #allocation1 [shape = 'u32[144,128]{1,0:T(1,128)}', space=vmem, size = 0x12000, scoped, tag = 'internal scratch']
  #allocation2 [shape = 'f32[8,128]{1,0:T(8,128)}', space=vmem, size = 0x1000, scoped, tag = 'scratch operand']
  %s0 = inlined_call_operand.vmem [shape: bf16[8,8,384], index: 0, kind: input, shape index: {}]
  %s1 = inlined_call_operand.vmem [shape: f32[8,128], index: 1, kind: input, shape index: {}]
  %s2 = inlined_call_operand.vmem [shape: bf16[128,256], index: 2, kind: input, shape index: {}]
  %s3 = inlined_call_operand.vmem [shape: bf16[128,128], index: 3, kind: input, shape index: {}]
  %s4 = inlined_call_operand.vmem [shape: f32[8,8,128], index: 4, kind: output, shape index: {}]
  %s5 = sld [smem:[#allocation0]]
  $region30: #{gru_forward.1} parent=0
    _
  %s7 = ssub.s32 1, %s5
  %s8 = scalar_select 0, %s7, %s5
  // Predicated region
  $region2: #{gru_forward.1} parent=0 // pred_check
    _
  $region3: #{gru_forward.1} parent=0 // pred_check_branch
    %10 = sbr.rel (0) target = $region5
  $region4: #{gru_forward.1} parent=0 // pred_region
    _
  $region5: #{gru_forward.1} parent=0 // pred_fallthru
    _
  // Predicated region
  $region6: #{gru_forward.1} parent=0 // pred_check
    _
  $region7: #{gru_forward.1} parent=0 // pred_check_branch
    %12 = sbr.rel (0) target = $region9
  $region8: #{gru_forward.1} parent=0 // pred_region
    _
  $region9: #{gru_forward.1} parent=0 // pred_fallthru
    _
  // Predicated region
  $region10: #{gru_forward.1} parent=0 // pred_check
    _
  $region11: #{gru_forward.1} parent=0 // pred_check_branch
    %14 = sbr.rel (0) target = $region13
  $region12: #{gru_forward.1} parent=0 // pred_region
    _
  $region13: #{gru_forward.1} parent=0 // pred_fallthru
    _
  // Predicated region
  $region14: #{gru_forward.1} parent=0 // pred_check
    _
  $region15: #{gru_forward.1} parent=0 // pred_check_branch
    %16 = sbr.rel (0) target = $region17
  $region16: #{gru_forward.1} parent=0 // pred_region
    _
  $region17: #{gru_forward.1} parent=0 // pred_fallthru
    _
  %p18 = scmp.eq.s32.totalorder 0, 0
  // Predicated region
  $region18: #{gru_forward.1} parent=0 // pred_check
    %p19 = pneg %p18
  $region19: #{gru_forward.1} parent=0 // pred_check_branch
    %21 = sbr.rel (%p19) target = $region21
  $region20: #{gru_forward.1} parent=0 // pred_region
    %v22 = vld [vmem:[%s1] sm:$0xff]
    %23 = vst [vmem:[#allocation2] sm:$0xff] %v22
  $region21: #{gru_forward.1} parent=0 // pred_fallthru
    _
  %v24 = vld [vmem:[%s2] sm:$0xff]
  %v25 = vld [vmem:[%s2 + $0x8] sm:$0xff]
  %v26 = vld [vmem:[%s2 + $0x10] sm:$0xff]
  %v27 = vld [vmem:[%s2 + $0x18] sm:$0xff]
  %v28 = vld [vmem:[%s2 + $0x20] sm:$0xff]
  %v29 = vld [vmem:[%s2 + $0x28] sm:$0xff]
  %v30 = vld [vmem:[%s2 + $0x30] sm:$0xff]
  %v31 = vld [vmem:[%s2 + $0x38] sm:$0xff]
  %v32 = vld [vmem:[%s2 + $0x40] sm:$0xff]
  %v33 = vld [vmem:[%s2 + $0x48] sm:$0xff]
  %v34 = vld [vmem:[%s2 + $0x50] sm:$0xff]
  %v35 = vld [vmem:[%s2 + $0x58] sm:$0xff]
  %v36 = vld [vmem:[%s2 + $0x60] sm:$0xff]
  %v37 = vld [vmem:[%s2 + $0x68] sm:$0xff]
  %v38 = vld [vmem:[%s2 + $0x70] sm:$0xff]
  %v39 = vld [vmem:[%s2 + $0x78] sm:$0xff]
  %v40 = vld [vmem:[%s3] sm:$0xf]
  %v41 = vld [vmem:[%s3 + $0x4] sm:$0xf]
  %v42 = vld [vmem:[%s3 + $0x8] sm:$0xf]
  %v43 = vld [vmem:[%s3 + $0xc] sm:$0xf]
  %v44 = vld [vmem:[%s3 + $0x10] sm:$0xf]
  %v45 = vld [vmem:[%s3 + $0x14] sm:$0xf]
  %v46 = vld [vmem:[%s3 + $0x18] sm:$0xf]
  %v47 = vld [vmem:[%s3 + $0x1c] sm:$0xf]
  %v48 = vld [vmem:[%s3 + $0x20] sm:$0xf]
  %v49 = vld [vmem:[%s3 + $0x24] sm:$0xf]
  %v50 = vld [vmem:[%s3 + $0x28] sm:$0xf]
  %v51 = vld [vmem:[%s3 + $0x2c] sm:$0xf]
  %v52 = vld [vmem:[%s3 + $0x30] sm:$0xf]
  %v53 = vld [vmem:[%s3 + $0x34] sm:$0xf]
  %v54 = vld [vmem:[%s3 + $0x38] sm:$0xf]
  %v55 = vld [vmem:[%s3 + $0x3c] sm:$0xf]
  %v56 = vld [vmem:[#allocation2] sm:$0xff]
  %v57 = vld [vmem:[%s0] sm:$0xff]
  %v58 = vld [vmem:[%s0 + $0x8] sm:$0xf]
  %v59 = vunpack.c.l.bf16 %v57
  %v60 = vunpack.c.h.bf16 %v57
  %v61 = vunpack.c.l.bf16 %v58
  %v62 = vpack.c.bf16 %v56, %v56
  %v79 = vunpack.c.l.b16 %v24
  %v80 = vunpack.c.h.b16 %v24
  %v81 = vunpack.c.l.b16 %v25
  %v82 = vunpack.c.h.b16 %v25
  %v83 = vunpack.c.l.b16 %v26
  %v84 = vunpack.c.h.b16 %v26
  %v85 = vunpack.c.l.b16 %v27
  %v86 = vunpack.c.h.b16 %v27
  %v87 = vunpack.c.l.b16 %v28
  %v88 = vunpack.c.h.b16 %v28
  %v89 = vunpack.c.l.b16 %v29
  %v90 = vunpack.c.h.b16 %v29
  %v91 = vunpack.c.l.b16 %v30
  %v92 = vunpack.c.h.b16 %v30
  %v93 = vunpack.c.l.b16 %v31
  %v94 = vunpack.c.h.b16 %v31
  %v95 = vunpack.c.l.b16 %v32
  %v96 = vunpack.c.h.b16 %v32
  %v97 = vunpack.c.l.b16 %v33
  %v98 = vunpack.c.h.b16 %v33
  %v99 = vunpack.c.l.b16 %v34
  %v100 = vunpack.c.h.b16 %v34
  %v101 = vunpack.c.l.b16 %v35
  %v102 = vunpack.c.h.b16 %v35
  %v103 = vunpack.c.l.b16 %v36
  %v104 = vunpack.c.h.b16 %v36
  %v105 = vunpack.c.l.b16 %v37
  %v106 = vunpack.c.h.b16 %v37
  %v107 = vunpack.c.l.b16 %v38
  %v108 = vunpack.c.h.b16 %v38
  %v109 = vunpack.c.l.b16 %v39
  %v110 = vunpack.c.h.b16 %v39
  %v111 = vpack.c.b16 %v81, %v79
  %v112 = vpack.c.b16 %v82, %v80
  %v113 = vpack.c.b16 %v85, %v83
  %v114 = vpack.c.b16 %v86, %v84
  %v115 = vpack.c.b16 %v89, %v87
  %v116 = vpack.c.b16 %v90, %v88
  %v117 = vpack.c.b16 %v93, %v91
  %v118 = vpack.c.b16 %v94, %v92
  %v119 = vpack.c.b16 %v97, %v95
  %v120 = vpack.c.b16 %v98, %v96
  %v121 = vpack.c.b16 %v101, %v99
  %v122 = vpack.c.b16 %v102, %v100
  %v123 = vpack.c.b16 %v105, %v103
  %v124 = vpack.c.b16 %v106, %v104
  %v125 = vpack.c.b16 %v109, %v107
  %v126 = vpack.c.b16 %v110, %v108
  %143 = vmatprep.subr.bf16.mxu0 %v112
  %144 = vmatpush1.bf16.msra.mxu0 %v111
  %145 = vmatprep.subr.bf16.mxu0 %v114
  %146 = vmatpush1.bf16.msra.mxu0 %v113
  %147 = vmatprep.subr.bf16.mxu0 %v116
  %148 = vmatpush1.bf16.msra.mxu0 %v115
  %149 = vmatprep.subr.bf16.mxu0 %v118
  %150 = vmatpush1.bf16.msra.mxu0 %v117
  %151 = vmatprep.subr.bf16.mxu0 %v120
  %152 = vmatpush1.bf16.msra.mxu0 %v119
  %153 = vmatprep.subr.bf16.mxu0 %v122
  %154 = vmatpush1.bf16.msra.mxu0 %v121
  %155 = vmatprep.subr.bf16.mxu0 %v124
  %156 = vmatpush1.bf16.msra.mxu0 %v123
  %157 = vmatprep.subr.bf16.mxu0 %v126
  %158 = vmatpush1.bf16.msra.mxu0 %v125
  %159 = vmatprep.subr.bf16.mxu0 0
  %160 = vmatpush1.bf16.msra.mxu0 0
  %161 = vmatprep.subr.bf16.mxu0 0
  %162 = vmatpush1.bf16.msra.mxu0 0
  %163 = vmatprep.subr.bf16.mxu0 0
  %164 = vmatpush1.bf16.msra.mxu0 0
  %165 = vmatprep.subr.bf16.mxu0 0
  %166 = vmatpush1.bf16.msra.mxu0 0
  %167 = vmatprep.subr.bf16.mxu0 0
  %168 = vmatpush1.bf16.msra.mxu0 0
  %169 = vmatprep.subr.bf16.mxu0 0
  %170 = vmatpush1.bf16.msra.mxu0 0
  %171 = vmatprep.subr.bf16.mxu0 0
  %172 = vmatpush1.bf16.msra.mxu0 0
  %173 = vmatprep.subr.bf16.mxu0 0
  %174 = vmatpush1.bf16.msra.mxu0 0
  %175 = vmatprep.mubr.bf16.mxu0 0
  %176 = vmatmul.mubr.bf16.gmra.mrb[0].mxu0 %v62
  %v177 = vpop.f32.mrb[0].mxu0
  %v178 = vadd.f32 0.0, %v177
  %v179 = vpop.f32.mrb[0].mxu0
  %v180 = vadd.f32 0.0, %v179
  %v181 = vpop.f32.mrb[0].mxu0
  %v182 = vpop.f32.mrb[0].mxu0
  %183 = vdwg.mxu0
  %v184 = vadd.f32 %v59, %v178
  %v185 = vadd.f32 %v60, %v180
  %v186 = vxor.u32 %v184, 2147483648
  %v187 = vxor.u32 %v185, 2147483648
  %v188 = vmul.f32 %v186, 1.442695
  %v189 = vpow.pop %v188
  %v190 = vmul.f32 %v187, 1.442695
  %v191 = vpow.pop %v190
  %v192 = vadd.f32 %v189, 1.0
  %v193 = vadd.f32 %v191, 1.0
  %v194 = vrcp.pop %v192
  %v195 = vmul.f32 1.0, %v194
  %v196 = vrcp.pop %v193
  %v197 = vmul.f32 1.0, %v196
  %v198 = vmul.f32 %v197, %v56
  %v199 = vpack.c.bf16 %v198, %v198
  %v216 = vunpack.c.l.b16 %v40
  %v217 = vunpack.c.l.b16 %v41
  %v218 = vunpack.c.l.b16 %v42
  %v219 = vunpack.c.l.b16 %v43
  %v220 = vunpack.c.l.b16 %v44
  %v221 = vunpack.c.l.b16 %v45
  %v222 = vunpack.c.l.b16 %v46
  %v223 = vunpack.c.l.b16 %v47
  %v224 = vunpack.c.l.b16 %v48
  %v225 = vunpack.c.l.b16 %v49
  %v226 = vunpack.c.l.b16 %v50
  %v227 = vunpack.c.l.b16 %v51
  %v228 = vunpack.c.l.b16 %v52
  %v229 = vunpack.c.l.b16 %v53
  %v230 = vunpack.c.l.b16 %v54
  %v231 = vunpack.c.l.b16 %v55
  %v232 = vpack.c.b16 %v217, %v216
  %v233 = vpack.c.b16 %v219, %v218
  %v234 = vpack.c.b16 %v221, %v220
  %v235 = vpack.c.b16 %v223, %v222
  %v236 = vpack.c.b16 %v225, %v224
  %v237 = vpack.c.b16 %v227, %v226
  %v238 = vpack.c.b16 %v229, %v228
  %v239 = vpack.c.b16 %v231, %v230
  %248 = vmatprep.subr.bf16.mxu0 0
  %249 = vmatpush1.bf16.msra.mxu0 %v232
  %250 = vmatprep.subr.bf16.mxu0 0
  %251 = vmatpush1.bf16.msra.mxu0 %v233
  %252 = vmatprep.subr.bf16.mxu0 0
  %253 = vmatpush1.bf16.msra.mxu0 %v234
  %254 = vmatprep.subr.bf16.mxu0 0
  %255 = vmatpush1.bf16.msra.mxu0 %v235
  %256 = vmatprep.subr.bf16.mxu0 0
  %257 = vmatpush1.bf16.msra.mxu0 %v236
  %258 = vmatprep.subr.bf16.mxu0 0
  %259 = vmatpush1.bf16.msra.mxu0 %v237
  %260 = vmatprep.subr.bf16.mxu0 0
  %261 = vmatpush1.bf16.msra.mxu0 %v238
  %262 = vmatprep.subr.bf16.mxu0 0
  %263 = vmatpush1.bf16.msra.mxu0 %v239
  %264 = vmatprep.subr.bf16.mxu0 0
  %265 = vmatpush1.bf16.msra.mxu0 0
  %266 = vmatprep.subr.bf16.mxu0 0
  %267 = vmatpush1.bf16.msra.mxu0 0
  %268 = vmatprep.subr.bf16.mxu0 0
  %269 = vmatpush1.bf16.msra.mxu0 0
  %270 = vmatprep.subr.bf16.mxu0 0
  %271 = vmatpush1.bf16.msra.mxu0 0
  %272 = vmatprep.subr.bf16.mxu0 0
  %273 = vmatpush1.bf16.msra.mxu0 0
  %274 = vmatprep.subr.bf16.mxu0 0
  %275 = vmatpush1.bf16.msra.mxu0 0
  %276 = vmatprep.subr.bf16.mxu0 0
  %277 = vmatpush1.bf16.msra.mxu0 0
  %278 = vmatprep.subr.bf16.mxu0 0
  %279 = vmatpush1.bf16.msra.mxu0 0
  %280 = vmatprep.mubr.bf16.mxu0 0
  %281 = vmatmul.mubr.bf16.gmra.mrb[0].mxu0 %v199
  %v282 = vpop.f32.mrb[0].mxu0
  %v283 = vadd.f32 0.0, %v282
  %v284 = vpop.f32.mrb[0].mxu0
  %v285 = vpop.f32.mrb[0].mxu0
  %v286 = vpop.f32.mrb[0].mxu0
  %287 = vdwg.mxu0
  %v288 = vadd.f32 %v61, %v283
  %v289 = vtanh.pop %v288
  %v290 = vsub.f32 %v289, %v56
  %v291 = vmul.f32 %v195, %v290
  %v292 = vadd.f32 %v56, %v291
  %293 = vst [vmem:[%s4] sm:$0xff] %v292
  %s294 = scalar_lea.vmem %s0, 12
  %v295 = vld [vmem:[%s294] sm:$0xff]
  %v296 = vld [vmem:[%s294 + $0x8] sm:$0xf]
  %v297 = vunpack.c.l.bf16 %v295
  %v298 = vunpack.c.h.bf16 %v295
  %v299 = vunpack.c.l.bf16 %v296
  %v300 = vpack.c.bf16 %v292, %v292
  %301 = vmatprep.subr.bf16.mxu0 %v112
  %302 = vmatpush1.bf16.msra.mxu0 %v111
  %303 = vmatprep.subr.bf16.mxu0 %v114
  %304 = vmatpush1.bf16.msra.mxu0 %v113
  %305 = vmatprep.subr.bf16.mxu0 %v116
  %306 = vmatpush1.bf16.msra.mxu0 %v115
  %307 = vmatprep.subr.bf16.mxu0 %v118
  %308 = vmatpush1.bf16.msra.mxu0 %v117
  %309 = vmatprep.subr.bf16.mxu0 %v120
  %310 = vmatpush1.bf16.msra.mxu0 %v119
  %311 = vmatprep.subr.bf16.mxu0 %v122
  %312 = vmatpush1.bf16.msra.mxu0 %v121
  %313 = vmatprep.subr.bf16.mxu0 %v124
  %314 = vmatpush1.bf16.msra.mxu0 %v123
  %315 = vmatprep.subr.bf16.mxu0 %v126
  %316 = vmatpush1.bf16.msra.mxu0 %v125
  %317 = vmatprep.subr.bf16.mxu0 0
  %318 = vmatpush1.bf16.msra.mxu0 0
  %319 = vmatprep.subr.bf16.mxu0 0
  %320 = vmatpush1.bf16.msra.mxu0 0
  %321 = vmatprep.subr.bf16.mxu0 0
  %322 = vmatpush1.bf16.msra.mxu0 0
  %323 = vmatprep.subr.bf16.mxu0 0
  %324 = vmatpush1.bf16.msra.mxu0 0
  %325 = vmatprep.subr.bf16.mxu0 0
  %326 = vmatpush1.bf16.msra.mxu0 0
  %327 = vmatprep.subr.bf16.mxu0 0
  %328 = vmatpush1.bf16.msra.mxu0 0
  %329 = vmatprep.subr.bf16.mxu0 0
  %330 = vmatpush1.bf16.msra.mxu0 0
  %331 = vmatprep.subr.bf16.mxu0 0
  %332 = vmatpush1.bf16.msra.mxu0 0
  %333 = vmatprep.mubr.bf16.mxu0 0
  %334 = vmatmul.mubr.bf16.gmra.mrb[0].mxu0 %v300
  %v335 = vpop.f32.mrb[0].mxu0
  %v336 = vadd.f32 0.0, %v335
  %v337 = vpop.f32.mrb[0].mxu0
  %v338 = vadd.f32 0.0, %v337
  %v339 = vpop.f32.mrb[0].mxu0
  %v340 = vpop.f32.mrb[0].mxu0
  %341 = vdwg.mxu0
  %v342 = vadd.f32 %v297, %v336
  %v343 = vadd.f32 %v298, %v338
  %v344 = vxor.u32 %v342, 2147483648
  %v345 = vxor.u32 %v343, 2147483648
  %v346 = vmul.f32 %v344, 1.442695
  %v347 = vpow.pop %v346
  %v348 = vmul.f32 %v345, 1.442695
  %v349 = vpow.pop %v348
  %v350 = vadd.f32 %v347, 1.0
  %v351 = vadd.f32 %v349, 1.0
  %v352 = vrcp.pop %v350
  %v353 = vmul.f32 1.0, %v352
  %v354 = vrcp.pop %v351
  %v355 = vmul.f32 1.0, %v354
  %v356 = vmul.f32 %v355, %v292
  %v357 = vpack.c.bf16 %v356, %v356
  %358 = vmatprep.subr.bf16.mxu0 0
  %359 = vmatpush1.bf16.msra.mxu0 %v232
  %360 = vmatprep.subr.bf16.mxu0 0
  %361 = vmatpush1.bf16.msra.mxu0 %v233
  %362 = vmatprep.subr.bf16.mxu0 0
  %363 = vmatpush1.bf16.msra.mxu0 %v234
  %364 = vmatprep.subr.bf16.mxu0 0
  %365 = vmatpush1.bf16.msra.mxu0 %v235
  %366 = vmatprep.subr.bf16.mxu0 0
  %367 = vmatpush1.bf16.msra.mxu0 %v236
  %368 = vmatprep.subr.bf16.mxu0 0
  %369 = vmatpush1.bf16.msra.mxu0 %v237
  %370 = vmatprep.subr.bf16.mxu0 0
  %371 = vmatpush1.bf16.msra.mxu0 %v238
  %372 = vmatprep.subr.bf16.mxu0 0
  %373 = vmatpush1.bf16.msra.mxu0 %v239
  %374 = vmatprep.subr.bf16.mxu0 0
  %375 = vmatpush1.bf16.msra.mxu0 0
  %376 = vmatprep.subr.bf16.mxu0 0
  %377 = vmatpush1.bf16.msra.mxu0 0
  %378 = vmatprep.subr.bf16.mxu0 0
  %379 = vmatpush1.bf16.msra.mxu0 0
  %380 = vmatprep.subr.bf16.mxu0 0
  %381 = vmatpush1.bf16.msra.mxu0 0
  %382 = vmatprep.subr.bf16.mxu0 0
  %383 = vmatpush1.bf16.msra.mxu0 0
  %384 = vmatprep.subr.bf16.mxu0 0
  %385 = vmatpush1.bf16.msra.mxu0 0
  %386 = vmatprep.subr.bf16.mxu0 0
  %387 = vmatpush1.bf16.msra.mxu0 0
  %388 = vmatprep.subr.bf16.mxu0 0
  %389 = vmatpush1.bf16.msra.mxu0 0
  %390 = vmatprep.mubr.bf16.mxu0 0
  %391 = vmatmul.mubr.bf16.gmra.mrb[0].mxu0 %v357
  %v392 = vpop.f32.mrb[0].mxu0
  %v393 = vadd.f32 0.0, %v392
  %v394 = vpop.f32.mrb[0].mxu0
  %v395 = vpop.f32.mrb[0].mxu0
  %v396 = vpop.f32.mrb[0].mxu0
  %397 = vdwg.mxu0
  %v398 = vadd.f32 %v299, %v393
  %v399 = vtanh.pop %v398
  %v400 = vsub.f32 %v399, %v292
  %v401 = vmul.f32 %v353, %v400
  %v402 = vadd.f32 %v292, %v401
  %s403 = scalar_lea.vmem %s4, 8
  %404 = vst [vmem:[%s403] sm:$0xff] %v402
  %s405 = scalar_lea.vmem %s0, 24
  %v406 = vld [vmem:[%s405] sm:$0xff]
  %v407 = vld [vmem:[%s405 + $0x8] sm:$0xf]
  %v408 = vunpack.c.l.bf16 %v406
  %v409 = vunpack.c.h.bf16 %v406
  %v410 = vunpack.c.l.bf16 %v407
  %v411 = vpack.c.bf16 %v402, %v402
  %412 = vmatprep.subr.bf16.mxu0 %v112
  %413 = vmatpush1.bf16.msra.mxu0 %v111
  %414 = vmatprep.subr.bf16.mxu0 %v114
  %415 = vmatpush1.bf16.msra.mxu0 %v113
  %416 = vmatprep.subr.bf16.mxu0 %v116
  %417 = vmatpush1.bf16.msra.mxu0 %v115
  %418 = vmatprep.subr.bf16.mxu0 %v118
  %419 = vmatpush1.bf16.msra.mxu0 %v117
  %420 = vmatprep.subr.bf16.mxu0 %v120
  %421 = vmatpush1.bf16.msra.mxu0 %v119
  %422 = vmatprep.subr.bf16.mxu0 %v122
  %423 = vmatpush1.bf16.msra.mxu0 %v121
  %424 = vmatprep.subr.bf16.mxu0 %v124
  %425 = vmatpush1.bf16.msra.mxu0 %v123
  %426 = vmatprep.subr.bf16.mxu0 %v126
  %427 = vmatpush1.bf16.msra.mxu0 %v125
  %428 = vmatprep.subr.bf16.mxu0 0
  %429 = vmatpush1.bf16.msra.mxu0 0
  %430 = vmatprep.subr.bf16.mxu0 0
  %431 = vmatpush1.bf16.msra.mxu0 0
  %432 = vmatprep.subr.bf16.mxu0 0
  %433 = vmatpush1.bf16.msra.mxu0 0
  %434 = vmatprep.subr.bf16.mxu0 0
  %435 = vmatpush1.bf16.msra.mxu0 0
  %436 = vmatprep.subr.bf16.mxu0 0
  %437 = vmatpush1.bf16.msra.mxu0 0
  %438 = vmatprep.subr.bf16.mxu0 0
  %439 = vmatpush1.bf16.msra.mxu0 0
  %440 = vmatprep.subr.bf16.mxu0 0
  %441 = vmatpush1.bf16.msra.mxu0 0
  %442 = vmatprep.subr.bf16.mxu0 0
  %443 = vmatpush1.bf16.msra.mxu0 0
  %444 = vmatprep.mubr.bf16.mxu0 0
  %445 = vmatmul.mubr.bf16.gmra.mrb[0].mxu0 %v411
  %v446 = vpop.f32.mrb[0].mxu0
  %v447 = vadd.f32 0.0, %v446
  %v448 = vpop.f32.mrb[0].mxu0
  %v449 = vadd.f32 0.0, %v448
  %v450 = vpop.f32.mrb[0].mxu0
  %v451 = vpop.f32.mrb[0].mxu0
  %452 = vdwg.mxu0
  %v453 = vadd.f32 %v408, %v447
  %v454 = vadd.f32 %v409, %v449
  %v455 = vxor.u32 %v453, 2147483648
  %v456 = vxor.u32 %v454, 2147483648
  %v457 = vmul.f32 %v455, 1.442695
  %v458 = vpow.pop %v457
  %v459 = vmul.f32 %v456, 1.442695
  %v460 = vpow.pop %v459
  %v461 = vadd.f32 %v458, 1.0
  %v462 = vadd.f32 %v460, 1.0
  %v463 = vrcp.pop %v461
  %v464 = vmul.f32 1.0, %v463
  %v465 = vrcp.pop %v462
  %v466 = vmul.f32 1.0, %v465
  %v467 = vmul.f32 %v466, %v402
  %v468 = vpack.c.bf16 %v467, %v467
  %469 = vmatprep.subr.bf16.mxu0 0
  %470 = vmatpush1.bf16.msra.mxu0 %v232
  %471 = vmatprep.subr.bf16.mxu0 0
  %472 = vmatpush1.bf16.msra.mxu0 %v233
  %473 = vmatprep.subr.bf16.mxu0 0
  %474 = vmatpush1.bf16.msra.mxu0 %v234
  %475 = vmatprep.subr.bf16.mxu0 0
  %476 = vmatpush1.bf16.msra.mxu0 %v235
  %477 = vmatprep.subr.bf16.mxu0 0
  %478 = vmatpush1.bf16.msra.mxu0 %v236
  %479 = vmatprep.subr.bf16.mxu0 0
  %480 = vmatpush1.bf16.msra.mxu0 %v237
  %481 = vmatprep.subr.bf16.mxu0 0
  %482 = vmatpush1.bf16.msra.mxu0 %v238
  %483 = vmatprep.subr.bf16.mxu0 0
  %484 = vmatpush1.bf16.msra.mxu0 %v239
  %485 = vmatprep.subr.bf16.mxu0 0
  %486 = vmatpush1.bf16.msra.mxu0 0
  %487 = vmatprep.subr.bf16.mxu0 0
  %488 = vmatpush1.bf16.msra.mxu0 0
  %489 = vmatprep.subr.bf16.mxu0 0
  %490 = vmatpush1.bf16.msra.mxu0 0
  %491 = vmatprep.subr.bf16.mxu0 0
  %492 = vmatpush1.bf16.msra.mxu0 0
  %493 = vmatprep.subr.bf16.mxu0 0
  %494 = vmatpush1.bf16.msra.mxu0 0
  %495 = vmatprep.subr.bf16.mxu0 0
  %496 = vmatpush1.bf16.msra.mxu0 0
  %497 = vmatprep.subr.bf16.mxu0 0
  %498 = vmatpush1.bf16.msra.mxu0 0
  %499 = vmatprep.subr.bf16.mxu0 0
  %500 = vmatpush1.bf16.msra.mxu0 0
  %501 = vmatprep.mubr.bf16.mxu0 0
  %502 = vmatmul.mubr.bf16.gmra.mrb[0].mxu0 %v468
  %v503 = vpop.f32.mrb[0].mxu0
  %v504 = vadd.f32 0.0, %v503
  %v505 = vpop.f32.mrb[0].mxu0
  %v506 = vpop.f32.mrb[0].mxu0
  %v507 = vpop.f32.mrb[0].mxu0
  %508 = vdwg.mxu0
  %v509 = vadd.f32 %v410, %v504
  %v510 = vtanh.pop %v509
  %v511 = vsub.f32 %v510, %v402
  %v512 = vmul.f32 %v464, %v511
  %v513 = vadd.f32 %v402, %v512
  %s514 = scalar_lea.vmem %s4, 16
  %515 = vst [vmem:[%s514] sm:$0xff] %v513
  %s516 = scalar_lea.vmem %s0, 36
  %v517 = vld [vmem:[%s516] sm:$0xff]
  %v518 = vld [vmem:[%s516 + $0x8] sm:$0xf]
  %v519 = vunpack.c.l.bf16 %v517
  %v520 = vunpack.c.h.bf16 %v517
  %v521 = vunpack.c.l.bf16 %v518
  %v522 = vpack.c.bf16 %v513, %v513
  %523 = vmatprep.subr.bf16.mxu0 %v112
  %524 = vmatpush1.bf16.msra.mxu0 %v111
  %525 = vmatprep.subr.bf16.mxu0 %v114
  %526 = vmatpush1.bf16.msra.mxu0 %v113
  %527 = vmatprep.subr.bf16.mxu0 %v116
  %528 = vmatpush1.bf16.msra.mxu0 %v115
  %529 = vmatprep.subr.bf16.mxu0 %v118
  %530 = vmatpush1.bf16.msra.mxu0 %v117
  %531 = vmatprep.subr.bf16.mxu0 %v120
  %532 = vmatpush1.bf16.msra.mxu0 %v119
  %533 = vmatprep.subr.bf16.mxu0 %v122
  %534 = vmatpush1.bf16.msra.mxu0 %v121
  %535 = vmatprep.subr.bf16.mxu0 %v124
  %536 = vmatpush1.bf16.msra.mxu0 %v123
  %537 = vmatprep.subr.bf16.mxu0 %v126
  %538 = vmatpush1.bf16.msra.mxu0 %v125
  %539 = vmatprep.subr.bf16.mxu0 0
  %540 = vmatpush1.bf16.msra.mxu0 0
  %541 = vmatprep.subr.bf16.mxu0 0
  %542 = vmatpush1.bf16.msra.mxu0 0
  %543 = vmatprep.subr.bf16.mxu0 0
  %544 = vmatpush1.bf16.msra.mxu0 0
  %545 = vmatprep.subr.bf16.mxu0 0
  %546 = vmatpush1.bf16.msra.mxu0 0
  %547 = vmatprep.subr.bf16.mxu0 0
  %548 = vmatpush1.bf16.msra.mxu0 0
  %549 = vmatprep.subr.bf16.mxu0 0
  %550 = vmatpush1.bf16.msra.mxu0 0
  %551 = vmatprep.subr.bf16.mxu0 0
  %552 = vmatpush1.bf16.msra.mxu0 0
  %553 = vmatprep.subr.bf16.mxu0 0
  %554 = vmatpush1.bf16.msra.mxu0 0
  %555 = vmatprep.mubr.bf16.mxu0 0
  %556 = vmatmul.mubr.bf16.gmra.mrb[0].mxu0 %v522
  %v557 = vpop.f32.mrb[0].mxu0
  %v558 = vadd.f32 0.0, %v557
  %v559 = vpop.f32.mrb[0].mxu0
  %v560 = vadd.f32 0.0, %v559
  %v561 = vpop.f32.mrb[0].mxu0
  %v562 = vpop.f32.mrb[0].mxu0
  %563 = vdwg.mxu0
  %v564 = vadd.f32 %v519, %v558
  %v565 = vadd.f32 %v520, %v560
  %v566 = vxor.u32 %v564, 2147483648
  %v567 = vxor.u32 %v565, 2147483648
  %v568 = vmul.f32 %v566, 1.442695
  %v569 = vpow.pop %v568
  %v570 = vmul.f32 %v567, 1.442695
  %v571 = vpow.pop %v570
  %v572 = vadd.f32 %v569, 1.0
  %v573 = vadd.f32 %v571, 1.0
  %v574 = vrcp.pop %v572
  %v575 = vmul.f32 1.0, %v574
  %v576 = vrcp.pop %v573
  %v577 = vmul.f32 1.0, %v576
  %v578 = vmul.f32 %v577, %v513
  %v579 = vpack.c.bf16 %v578, %v578
  %580 = vmatprep.subr.bf16.mxu0 0
  %581 = vmatpush1.bf16.msra.mxu0 %v232
  %582 = vmatprep.subr.bf16.mxu0 0
  %583 = vmatpush1.bf16.msra.mxu0 %v233
  %584 = vmatprep.subr.bf16.mxu0 0
  %585 = vmatpush1.bf16.msra.mxu0 %v234
  %586 = vmatprep.subr.bf16.mxu0 0
  %587 = vmatpush1.bf16.msra.mxu0 %v235
  %588 = vmatprep.subr.bf16.mxu0 0
  %589 = vmatpush1.bf16.msra.mxu0 %v236
  %590 = vmatprep.subr.bf16.mxu0 0
  %591 = vmatpush1.bf16.msra.mxu0 %v237
  %592 = vmatprep.subr.bf16.mxu0 0
  %593 = vmatpush1.bf16.msra.mxu0 %v238
  %594 = vmatprep.subr.bf16.mxu0 0
  %595 = vmatpush1.bf16.msra.mxu0 %v239
  %596 = vmatprep.subr.bf16.mxu0 0
  %597 = vmatpush1.bf16.msra.mxu0 0
  %598 = vmatprep.subr.bf16.mxu0 0
  %599 = vmatpush1.bf16.msra.mxu0 0
  %600 = vmatprep.subr.bf16.mxu0 0
  %601 = vmatpush1.bf16.msra.mxu0 0
  %602 = vmatprep.subr.bf16.mxu0 0
  %603 = vmatpush1.bf16.msra.mxu0 0
  %604 = vmatprep.subr.bf16.mxu0 0
  %605 = vmatpush1.bf16.msra.mxu0 0
  %606 = vmatprep.subr.bf16.mxu0 0
  %607 = vmatpush1.bf16.msra.mxu0 0
  %608 = vmatprep.subr.bf16.mxu0 0
  %609 = vmatpush1.bf16.msra.mxu0 0
  %610 = vmatprep.subr.bf16.mxu0 0
  %611 = vmatpush1.bf16.msra.mxu0 0
  %612 = vmatprep.mubr.bf16.mxu0 0
  %613 = vmatmul.mubr.bf16.gmra.mrb[0].mxu0 %v579
  %v614 = vpop.f32.mrb[0].mxu0
  %v615 = vadd.f32 0.0, %v614
  %v616 = vpop.f32.mrb[0].mxu0
  %v617 = vpop.f32.mrb[0].mxu0
  %v618 = vpop.f32.mrb[0].mxu0
  %619 = vdwg.mxu0
  %v620 = vadd.f32 %v521, %v615
  %v621 = vtanh.pop %v620
  %v622 = vsub.f32 %v621, %v513
  %v623 = vmul.f32 %v575, %v622
  %v624 = vadd.f32 %v513, %v623
  %s625 = scalar_lea.vmem %s4, 24
  %626 = vst [vmem:[%s625] sm:$0xff] %v624
  %s627 = scalar_lea.vmem %s0, 48
  %v628 = vld [vmem:[%s627] sm:$0xff]
  %v629 = vld [vmem:[%s627 + $0x8] sm:$0xf]
  %v630 = vunpack.c.l.bf16 %v628
  %v631 = vunpack.c.h.bf16 %v628
  %v632 = vunpack.c.l.bf16 %v629
  %v633 = vpack.c.bf16 %v624, %v624
  %634 = vmatprep.subr.bf16.mxu0 %v112
  %635 = vmatpush1.bf16.msra.mxu0 %v111
  %636 = vmatprep.subr.bf16.mxu0 %v114
  %637 = vmatpush1.bf16.msra.mxu0 %v113
  %638 = vmatprep.subr.bf16.mxu0 %v116
  %639 = vmatpush1.bf16.msra.mxu0 %v115
  %640 = vmatprep.subr.bf16.mxu0 %v118
  %641 = vmatpush1.bf16.msra.mxu0 %v117
  %642 = vmatprep.subr.bf16.mxu0 %v120
  %643 = vmatpush1.bf16.msra.mxu0 %v119
  %644 = vmatprep.subr.bf16.mxu0 %v122
  %645 = vmatpush1.bf16.msra.mxu0 %v121
  %646 = vmatprep.subr.bf16.mxu0 %v124
  %647 = vmatpush1.bf16.msra.mxu0 %v123
  %648 = vmatprep.subr.bf16.mxu0 %v126
  %649 = vmatpush1.bf16.msra.mxu0 %v125
  %650 = vmatprep.subr.bf16.mxu0 0
  %651 = vmatpush1.bf16.msra.mxu0 0
  %652 = vmatprep.subr.bf16.mxu0 0
  %653 = vmatpush1.bf16.msra.mxu0 0
  %654 = vmatprep.subr.bf16.mxu0 0
  %655 = vmatpush1.bf16.msra.mxu0 0
  %656 = vmatprep.subr.bf16.mxu0 0
  %657 = vmatpush1.bf16.msra.mxu0 0
  %658 = vmatprep.subr.bf16.mxu0 0
  %659 = vmatpush1.bf16.msra.mxu0 0
  %660 = vmatprep.subr.bf16.mxu0 0
  %661 = vmatpush1.bf16.msra.mxu0 0
  %662 = vmatprep.subr.bf16.mxu0 0
  %663 = vmatpush1.bf16.msra.mxu0 0
  %664 = vmatprep.subr.bf16.mxu0 0
  %665 = vmatpush1.bf16.msra.mxu0 0
  %666 = vmatprep.mubr.bf16.mxu0 0
  %667 = vmatmul.mubr.bf16.gmra.mrb[0].mxu0 %v633
  %v668 = vpop.f32.mrb[0].mxu0
  %v669 = vadd.f32 0.0, %v668
  %v670 = vpop.f32.mrb[0].mxu0
  %v671 = vadd.f32 0.0, %v670
  %v672 = vpop.f32.mrb[0].mxu0
  %v673 = vpop.f32.mrb[0].mxu0
  %674 = vdwg.mxu0
  %v675 = vadd.f32 %v630, %v669
  %v676 = vadd.f32 %v631, %v671
  %v677 = vxor.u32 %v675, 2147483648
  %v678 = vxor.u32 %v676, 2147483648
  %v679 = vmul.f32 %v677, 1.442695
  %v680 = vpow.pop %v679
  %v681 = vmul.f32 %v678, 1.442695
  %v682 = vpow.pop %v681
  %v683 = vadd.f32 %v680, 1.0
  %v684 = vadd.f32 %v682, 1.0
  %v685 = vrcp.pop %v683
  %v686 = vmul.f32 1.0, %v685
  %v687 = vrcp.pop %v684
  %v688 = vmul.f32 1.0, %v687
  %v689 = vmul.f32 %v688, %v624
  %v690 = vpack.c.bf16 %v689, %v689
  %691 = vmatprep.subr.bf16.mxu0 0
  %692 = vmatpush1.bf16.msra.mxu0 %v232
  %693 = vmatprep.subr.bf16.mxu0 0
  %694 = vmatpush1.bf16.msra.mxu0 %v233
  %695 = vmatprep.subr.bf16.mxu0 0
  %696 = vmatpush1.bf16.msra.mxu0 %v234
  %697 = vmatprep.subr.bf16.mxu0 0
  %698 = vmatpush1.bf16.msra.mxu0 %v235
  %699 = vmatprep.subr.bf16.mxu0 0
  %700 = vmatpush1.bf16.msra.mxu0 %v236
  %701 = vmatprep.subr.bf16.mxu0 0
  %702 = vmatpush1.bf16.msra.mxu0 %v237
  %703 = vmatprep.subr.bf16.mxu0 0
  %704 = vmatpush1.bf16.msra.mxu0 %v238
  %705 = vmatprep.subr.bf16.mxu0 0
  %706 = vmatpush1.bf16.msra.mxu0 %v239
  %707 = vmatprep.subr.bf16.mxu0 0
  %708 = vmatpush1.bf16.msra.mxu0 0
  %709 = vmatprep.subr.bf16.mxu0 0
  %710 = vmatpush1.bf16.msra.mxu0 0
  %711 = vmatprep.subr.bf16.mxu0 0
  %712 = vmatpush1.bf16.msra.mxu0 0
  %713 = vmatprep.subr.bf16.mxu0 0
  %714 = vmatpush1.bf16.msra.mxu0 0
  %715 = vmatprep.subr.bf16.mxu0 0
  %716 = vmatpush1.bf16.msra.mxu0 0
  %717 = vmatprep.subr.bf16.mxu0 0
  %718 = vmatpush1.bf16.msra.mxu0 0
  %719 = vmatprep.subr.bf16.mxu0 0
  %720 = vmatpush1.bf16.msra.mxu0 0
  %721 = vmatprep.subr.bf16.mxu0 0
  %722 = vmatpush1.bf16.msra.mxu0 0
  %723 = vmatprep.mubr.bf16.mxu0 0
  %724 = vmatmul.mubr.bf16.gmra.mrb[0].mxu0 %v690
  %v725 = vpop.f32.mrb[0].mxu0
  %v726 = vadd.f32 0.0, %v725
  %v727 = vpop.f32.mrb[0].mxu0
  %v728 = vpop.f32.mrb[0].mxu0
  %v729 = vpop.f32.mrb[0].mxu0
  %730 = vdwg.mxu0
  %v731 = vadd.f32 %v632, %v726
  %v732 = vtanh.pop %v731
  %v733 = vsub.f32 %v732, %v624
  %v734 = vmul.f32 %v686, %v733
  %v735 = vadd.f32 %v624, %v734
  %s736 = scalar_lea.vmem %s4, 32
  %737 = vst [vmem:[%s736] sm:$0xff] %v735
  %s738 = scalar_lea.vmem %s0, 60
  %v739 = vld [vmem:[%s738] sm:$0xff]
  %v740 = vld [vmem:[%s738 + $0x8] sm:$0xf]
  %v741 = vunpack.c.l.bf16 %v739
  %v742 = vunpack.c.h.bf16 %v739
  %v743 = vunpack.c.l.bf16 %v740
  %v744 = vpack.c.bf16 %v735, %v735
  %745 = vmatprep.subr.bf16.mxu0 %v112
  %746 = vmatpush1.bf16.msra.mxu0 %v111
  %747 = vmatprep.subr.bf16.mxu0 %v114
  %748 = vmatpush1.bf16.msra.mxu0 %v113
  %749 = vmatprep.subr.bf16.mxu0 %v116
  %750 = vmatpush1.bf16.msra.mxu0 %v115
  %751 = vmatprep.subr.bf16.mxu0 %v118
  %752 = vmatpush1.bf16.msra.mxu0 %v117
  %753 = vmatprep.subr.bf16.mxu0 %v120
  %754 = vmatpush1.bf16.msra.mxu0 %v119
  %755 = vmatprep.subr.bf16.mxu0 %v122
  %756 = vmatpush1.bf16.msra.mxu0 %v121
  %757 = vmatprep.subr.bf16.mxu0 %v124
  %758 = vmatpush1.bf16.msra.mxu0 %v123
  %759 = vmatprep.subr.bf16.mxu0 %v126
  %760 = vmatpush1.bf16.msra.mxu0 %v125
  %761 = vmatprep.subr.bf16.mxu0 0
  %762 = vmatpush1.bf16.msra.mxu0 0
  %763 = vmatprep.subr.bf16.mxu0 0
  %764 = vmatpush1.bf16.msra.mxu0 0
  %765 = vmatprep.subr.bf16.mxu0 0
  %766 = vmatpush1.bf16.msra.mxu0 0
  %767 = vmatprep.subr.bf16.mxu0 0
  %768 = vmatpush1.bf16.msra.mxu0 0
  %769 = vmatprep.subr.bf16.mxu0 0
  %770 = vmatpush1.bf16.msra.mxu0 0
  %771 = vmatprep.subr.bf16.mxu0 0
  %772 = vmatpush1.bf16.msra.mxu0 0
  %773 = vmatprep.subr.bf16.mxu0 0
  %774 = vmatpush1.bf16.msra.mxu0 0
  %775 = vmatprep.subr.bf16.mxu0 0
  %776 = vmatpush1.bf16.msra.mxu0 0
  %777 = vmatprep.mubr.bf16.mxu0 0
  %778 = vmatmul.mubr.bf16.gmra.mrb[0].mxu0 %v744
  %v779 = vpop.f32.mrb[0].mxu0
  %v780 = vadd.f32 0.0, %v779
  %v781 = vpop.f32.mrb[0].mxu0
  %v782 = vadd.f32 0.0, %v781
  %v783 = vpop.f32.mrb[0].mxu0
  %v784 = vpop.f32.mrb[0].mxu0
  %785 = vdwg.mxu0
  %v786 = vadd.f32 %v741, %v780
  %v787 = vadd.f32 %v742, %v782
  %v788 = vxor.u32 %v786, 2147483648
  %v789 = vxor.u32 %v787, 2147483648
  %v790 = vmul.f32 %v788, 1.442695
  %v791 = vpow.pop %v790
  %v792 = vmul.f32 %v789, 1.442695
  %v793 = vpow.pop %v792
  %v794 = vadd.f32 %v791, 1.0
  %v795 = vadd.f32 %v793, 1.0
  %v796 = vrcp.pop %v794
  %v797 = vmul.f32 1.0, %v796
  %v798 = vrcp.pop %v795
  %v799 = vmul.f32 1.0, %v798
  %v800 = vmul.f32 %v799, %v735
  %v801 = vpack.c.bf16 %v800, %v800
  %802 = vmatprep.subr.bf16.mxu0 0
  %803 = vmatpush1.bf16.msra.mxu0 %v232
  %804 = vmatprep.subr.bf16.mxu0 0
  %805 = vmatpush1.bf16.msra.mxu0 %v233
  %806 = vmatprep.subr.bf16.mxu0 0
  %807 = vmatpush1.bf16.msra.mxu0 %v234
  %808 = vmatprep.subr.bf16.mxu0 0
  %809 = vmatpush1.bf16.msra.mxu0 %v235
  %810 = vmatprep.subr.bf16.mxu0 0
  %811 = vmatpush1.bf16.msra.mxu0 %v236
  %812 = vmatprep.subr.bf16.mxu0 0
  %813 = vmatpush1.bf16.msra.mxu0 %v237
  %814 = vmatprep.subr.bf16.mxu0 0
  %815 = vmatpush1.bf16.msra.mxu0 %v238
  %816 = vmatprep.subr.bf16.mxu0 0
  %817 = vmatpush1.bf16.msra.mxu0 %v239
  %818 = vmatprep.subr.bf16.mxu0 0
  %819 = vmatpush1.bf16.msra.mxu0 0
  %820 = vmatprep.subr.bf16.mxu0 0
  %821 = vmatpush1.bf16.msra.mxu0 0
  %822 = vmatprep.subr.bf16.mxu0 0
  %823 = vmatpush1.bf16.msra.mxu0 0
  %824 = vmatprep.subr.bf16.mxu0 0
  %825 = vmatpush1.bf16.msra.mxu0 0
  %826 = vmatprep.subr.bf16.mxu0 0
  %827 = vmatpush1.bf16.msra.mxu0 0
  %828 = vmatprep.subr.bf16.mxu0 0
  %829 = vmatpush1.bf16.msra.mxu0 0
  %830 = vmatprep.subr.bf16.mxu0 0
  %831 = vmatpush1.bf16.msra.mxu0 0
  %832 = vmatprep.subr.bf16.mxu0 0
  %833 = vmatpush1.bf16.msra.mxu0 0
  %834 = vmatprep.mubr.bf16.mxu0 0
  %835 = vmatmul.mubr.bf16.gmra.mrb[0].mxu0 %v801
  %v836 = vpop.f32.mrb[0].mxu0
  %v837 = vadd.f32 0.0, %v836
  %v838 = vpop.f32.mrb[0].mxu0
  %v839 = vpop.f32.mrb[0].mxu0
  %v840 = vpop.f32.mrb[0].mxu0
  %841 = vdwg.mxu0
  %v842 = vadd.f32 %v743, %v837
  %v843 = vtanh.pop %v842
  %v844 = vsub.f32 %v843, %v735
  %v845 = vmul.f32 %v797, %v844
  %v846 = vadd.f32 %v735, %v845
  %s847 = scalar_lea.vmem %s4, 40
  %848 = vst [vmem:[%s847] sm:$0xff] %v846
  %s849 = scalar_lea.vmem %s0, 72
  %v850 = vld [vmem:[%s849] sm:$0xff]
  %v851 = vld [vmem:[%s849 + $0x8] sm:$0xf]
  %v852 = vunpack.c.l.bf16 %v850
  %v853 = vunpack.c.h.bf16 %v850
  %v854 = vunpack.c.l.bf16 %v851
  %v855 = vpack.c.bf16 %v846, %v846
  %856 = vmatprep.subr.bf16.mxu0 %v112
  %857 = vmatpush1.bf16.msra.mxu0 %v111
  %858 = vmatprep.subr.bf16.mxu0 %v114
  %859 = vmatpush1.bf16.msra.mxu0 %v113
  %860 = vmatprep.subr.bf16.mxu0 %v116
  %861 = vmatpush1.bf16.msra.mxu0 %v115
  %862 = vmatprep.subr.bf16.mxu0 %v118
  %863 = vmatpush1.bf16.msra.mxu0 %v117
  %864 = vmatprep.subr.bf16.mxu0 %v120
  %865 = vmatpush1.bf16.msra.mxu0 %v119
  %866 = vmatprep.subr.bf16.mxu0 %v122
  %867 = vmatpush1.bf16.msra.mxu0 %v121
  %868 = vmatprep.subr.bf16.mxu0 %v124
  %869 = vmatpush1.bf16.msra.mxu0 %v123
  %870 = vmatprep.subr.bf16.mxu0 %v126
  %871 = vmatpush1.bf16.msra.mxu0 %v125
  %872 = vmatprep.subr.bf16.mxu0 0
  %873 = vmatpush1.bf16.msra.mxu0 0
  %874 = vmatprep.subr.bf16.mxu0 0
  %875 = vmatpush1.bf16.msra.mxu0 0
  %876 = vmatprep.subr.bf16.mxu0 0
  %877 = vmatpush1.bf16.msra.mxu0 0
  %878 = vmatprep.subr.bf16.mxu0 0
  %879 = vmatpush1.bf16.msra.mxu0 0
  %880 = vmatprep.subr.bf16.mxu0 0
  %881 = vmatpush1.bf16.msra.mxu0 0
  %882 = vmatprep.subr.bf16.mxu0 0
  %883 = vmatpush1.bf16.msra.mxu0 0
  %884 = vmatprep.subr.bf16.mxu0 0
  %885 = vmatpush1.bf16.msra.mxu0 0
  %886 = vmatprep.subr.bf16.mxu0 0
  %887 = vmatpush1.bf16.msra.mxu0 0
  %888 = vmatprep.mubr.bf16.mxu0 0
  %889 = vmatmul.mubr.bf16.gmra.mrb[0].mxu0 %v855
  %v890 = vpop.f32.mrb[0].mxu0
  %v891 = vadd.f32 0.0, %v890
  %v892 = vpop.f32.mrb[0].mxu0
  %v893 = vadd.f32 0.0, %v892
  %v894 = vpop.f32.mrb[0].mxu0
  %v895 = vpop.f32.mrb[0].mxu0
  %896 = vdwg.mxu0
  %v897 = vadd.f32 %v852, %v891
  %v898 = vadd.f32 %v853, %v893
  %v899 = vxor.u32 %v897, 2147483648
  %v900 = vxor.u32 %v898, 2147483648
  %v901 = vmul.f32 %v899, 1.442695
  %v902 = vpow.pop %v901
  %v903 = vmul.f32 %v900, 1.442695
  %v904 = vpow.pop %v903
  %v905 = vadd.f32 %v902, 1.0
  %v906 = vadd.f32 %v904, 1.0
  %v907 = vrcp.pop %v905
  %v908 = vmul.f32 1.0, %v907
  %v909 = vrcp.pop %v906
  %v910 = vmul.f32 1.0, %v909
  %v911 = vmul.f32 %v910, %v846
  %v912 = vpack.c.bf16 %v911, %v911
  %913 = vmatprep.subr.bf16.mxu0 0
  %914 = vmatpush1.bf16.msra.mxu0 %v232
  %915 = vmatprep.subr.bf16.mxu0 0
  %916 = vmatpush1.bf16.msra.mxu0 %v233
  %917 = vmatprep.subr.bf16.mxu0 0
  %918 = vmatpush1.bf16.msra.mxu0 %v234
  %919 = vmatprep.subr.bf16.mxu0 0
  %920 = vmatpush1.bf16.msra.mxu0 %v235
  %921 = vmatprep.subr.bf16.mxu0 0
  %922 = vmatpush1.bf16.msra.mxu0 %v236
  %923 = vmatprep.subr.bf16.mxu0 0
  %924 = vmatpush1.bf16.msra.mxu0 %v237
  %925 = vmatprep.subr.bf16.mxu0 0
  %926 = vmatpush1.bf16.msra.mxu0 %v238
  %927 = vmatprep.subr.bf16.mxu0 0
  %928 = vmatpush1.bf16.msra.mxu0 %v239
  %929 = vmatprep.subr.bf16.mxu0 0
  %930 = vmatpush1.bf16.msra.mxu0 0
  %931 = vmatprep.subr.bf16.mxu0 0
  %932 = vmatpush1.bf16.msra.mxu0 0
  %933 = vmatprep.subr.bf16.mxu0 0
  %934 = vmatpush1.bf16.msra.mxu0 0
  %935 = vmatprep.subr.bf16.mxu0 0
  %936 = vmatpush1.bf16.msra.mxu0 0
  %937 = vmatprep.subr.bf16.mxu0 0
  %938 = vmatpush1.bf16.msra.mxu0 0
  %939 = vmatprep.subr.bf16.mxu0 0
  %940 = vmatpush1.bf16.msra.mxu0 0
  %941 = vmatprep.subr.bf16.mxu0 0
  %942 = vmatpush1.bf16.msra.mxu0 0
  %943 = vmatprep.subr.bf16.mxu0 0
  %944 = vmatpush1.bf16.msra.mxu0 0
  %945 = vmatprep.mubr.bf16.mxu0 0
  %946 = vmatmul.mubr.bf16.gmra.mrb[0].mxu0 %v912
  %v947 = vpop.f32.mrb[0].mxu0
  %v948 = vadd.f32 0.0, %v947
  %v949 = vpop.f32.mrb[0].mxu0
  %v950 = vpop.f32.mrb[0].mxu0
  %v951 = vpop.f32.mrb[0].mxu0
  %952 = vdwg.mxu0
  %v953 = vadd.f32 %v854, %v948
  %v954 = vtanh.pop %v953
  %v955 = vsub.f32 %v954, %v846
  %v956 = vmul.f32 %v908, %v955
  %v957 = vadd.f32 %v846, %v956
  %s958 = scalar_lea.vmem %s4, 48
  %959 = vst [vmem:[%s958] sm:$0xff] %v957
  %s960 = scalar_lea.vmem %s0, 84
  %v961 = vld [vmem:[%s960] sm:$0xff]
  %v962 = vld [vmem:[%s960 + $0x8] sm:$0xf]
  %v963 = vunpack.c.l.bf16 %v961
  %v964 = vunpack.c.h.bf16 %v961
  %v965 = vunpack.c.l.bf16 %v962
  %v966 = vpack.c.bf16 %v957, %v957
  %967 = vmatprep.subr.bf16.mxu0 %v112
  %968 = vmatpush1.bf16.msra.mxu0 %v111
  %969 = vmatprep.subr.bf16.mxu0 %v114
  %970 = vmatpush1.bf16.msra.mxu0 %v113
  %971 = vmatprep.subr.bf16.mxu0 %v116
  %972 = vmatpush1.bf16.msra.mxu0 %v115
  %973 = vmatprep.subr.bf16.mxu0 %v118
  %974 = vmatpush1.bf16.msra.mxu0 %v117
  %975 = vmatprep.subr.bf16.mxu0 %v120
  %976 = vmatpush1.bf16.msra.mxu0 %v119
  %977 = vmatprep.subr.bf16.mxu0 %v122
  %978 = vmatpush1.bf16.msra.mxu0 %v121
  %979 = vmatprep.subr.bf16.mxu0 %v124
  %980 = vmatpush1.bf16.msra.mxu0 %v123
  %981 = vmatprep.subr.bf16.mxu0 %v126
  %982 = vmatpush1.bf16.msra.mxu0 %v125
  %983 = vmatprep.subr.bf16.mxu0 0
  %984 = vmatpush1.bf16.msra.mxu0 0
  %985 = vmatprep.subr.bf16.mxu0 0
  %986 = vmatpush1.bf16.msra.mxu0 0
  %987 = vmatprep.subr.bf16.mxu0 0
  %988 = vmatpush1.bf16.msra.mxu0 0
  %989 = vmatprep.subr.bf16.mxu0 0
  %990 = vmatpush1.bf16.msra.mxu0 0
  %991 = vmatprep.subr.bf16.mxu0 0
  %992 = vmatpush1.bf16.msra.mxu0 0
  %993 = vmatprep.subr.bf16.mxu0 0
  %994 = vmatpush1.bf16.msra.mxu0 0
  %995 = vmatprep.subr.bf16.mxu0 0
  %996 = vmatpush1.bf16.msra.mxu0 0
  %997 = vmatprep.subr.bf16.mxu0 0
  %998 = vmatpush1.bf16.msra.mxu0 0
  %999 = vmatprep.mubr.bf16.mxu0 0
  %1000 = vmatmul.mubr.bf16.gmra.mrb[0].mxu0 %v966
  %v1001 = vpop.f32.mrb[0].mxu0
  %v1002 = vadd.f32 0.0, %v1001
  %v1003 = vpop.f32.mrb[0].mxu0
  %v1004 = vadd.f32 0.0, %v1003
  %v1005 = vpop.f32.mrb[0].mxu0
  %v1006 = vpop.f32.mrb[0].mxu0
  %1007 = vdwg.mxu0
  %v1008 = vadd.f32 %v963, %v1002
  %v1009 = vadd.f32 %v964, %v1004
  %v1010 = vxor.u32 %v1008, 2147483648
  %v1011 = vxor.u32 %v1009, 2147483648
  %v1012 = vmul.f32 %v1010, 1.442695
  %v1013 = vpow.pop %v1012
  %v1014 = vmul.f32 %v1011, 1.442695
  %v1015 = vpow.pop %v1014
  %v1016 = vadd.f32 %v1013, 1.0
  %v1017 = vadd.f32 %v1015, 1.0
  %v1018 = vrcp.pop %v1016
  %v1019 = vmul.f32 1.0, %v1018
  %v1020 = vrcp.pop %v1017
  %v1021 = vmul.f32 1.0, %v1020
  %v1022 = vmul.f32 %v1021, %v957
  %v1023 = vpack.c.bf16 %v1022, %v1022
  %1024 = vmatprep.subr.bf16.mxu0 0
  %1025 = vmatpush1.bf16.msra.mxu0 %v232
  %1026 = vmatprep.subr.bf16.mxu0 0
  %1027 = vmatpush1.bf16.msra.mxu0 %v233
  %1028 = vmatprep.subr.bf16.mxu0 0
  %1029 = vmatpush1.bf16.msra.mxu0 %v234
  %1030 = vmatprep.subr.bf16.mxu0 0
  %1031 = vmatpush1.bf16.msra.mxu0 %v235
  %1032 = vmatprep.subr.bf16.mxu0 0
  %1033 = vmatpush1.bf16.msra.mxu0 %v236
  %1034 = vmatprep.subr.bf16.mxu0 0
  %1035 = vmatpush1.bf16.msra.mxu0 %v237
  %1036 = vmatprep.subr.bf16.mxu0 0
  %1037 = vmatpush1.bf16.msra.mxu0 %v238
  %1038 = vmatprep.subr.bf16.mxu0 0
  %1039 = vmatpush1.bf16.msra.mxu0 %v239
  %1040 = vmatprep.subr.bf16.mxu0 0
  %1041 = vmatpush1.bf16.msra.mxu0 0
  %1042 = vmatprep.subr.bf16.mxu0 0
  %1043 = vmatpush1.bf16.msra.mxu0 0
  %1044 = vmatprep.subr.bf16.mxu0 0
  %1045 = vmatpush1.bf16.msra.mxu0 0
  %1046 = vmatprep.subr.bf16.mxu0 0
  %1047 = vmatpush1.bf16.msra.mxu0 0
  %1048 = vmatprep.subr.bf16.mxu0 0
  %1049 = vmatpush1.bf16.msra.mxu0 0
  %1050 = vmatprep.subr.bf16.mxu0 0
  %1051 = vmatpush1.bf16.msra.mxu0 0
  %1052 = vmatprep.subr.bf16.mxu0 0
  %1053 = vmatpush1.bf16.msra.mxu0 0
  %1054 = vmatprep.subr.bf16.mxu0 0
  %1055 = vmatpush1.bf16.msra.mxu0 0
  %1056 = vmatprep.mubr.bf16.mxu0 0
  %1057 = vmatmul.mubr.bf16.gmra.mrb[0].mxu0 %v1023
  %v1058 = vpop.f32.mrb[0].mxu0
  %v1059 = vadd.f32 0.0, %v1058
  %v1060 = vpop.f32.mrb[0].mxu0
  %v1061 = vpop.f32.mrb[0].mxu0
  %v1062 = vpop.f32.mrb[0].mxu0
  %1063 = vdwg.mxu0
  %v1064 = vadd.f32 %v965, %v1059
  %v1065 = vtanh.pop %v1064
  %v1066 = vsub.f32 %v1065, %v957
  %v1067 = vmul.f32 %v1019, %v1066
  %v1068 = vadd.f32 %v957, %v1067
  %s1069 = scalar_lea.vmem %s4, 56
  %1070 = vst [vmem:[%s1069] sm:$0xff] %v1068
  %1071 = vst [vmem:[#allocation2] sm:$0xff] %v1068
  // Predicated region
  $region22: #{gru_forward.1} parent=0 // pred_check
    _
  $region23: #{gru_forward.1} parent=0 // pred_check_branch
    %1073 = sbr.rel (0) target = $region25
  $region24: #{gru_forward.1} parent=0 // pred_region
    _
  $region25: #{gru_forward.1} parent=0 // pred_fallthru
    _
  // Predicated region
  $region26: #{gru_forward.1} parent=0 // pred_check
    _
  $region27: #{gru_forward.1} parent=0 // pred_check_branch
    %1075 = sbr.rel (0) target = $region29
  $region28: #{gru_forward.1} parent=0 // pred_region
    _
  $region29: #{gru_forward.1} parent=0 // pred_fallthru
    _

</llo_original>
